<compile_context>
chip_gen: v6e
topology: v6e:2x2x1
jax: 0.10.0
libtpu: 0.0.40
codegen_flags: <defaults>
</compile_context>

<pallas_src>
import math
import numpy as np
import jax
import jax.numpy as jnp
from jax.experimental import pallas as pl
from jax.experimental.pallas import tpu as pltpu

# ---------------- model config (small, consistent with ModelArgs) ----------------
DIM = 64
N_HEADS = 4
N_KV_HEADS = 2
N_REP = N_HEADS // N_KV_HEADS
HEAD_DIM = DIM // N_HEADS          # 16
HD2 = HEAD_DIM // 2                # 8
BATCH = 2
SEQ = 8
BS = BATCH * SEQ                   # 16 (folded rows)
MULTIPLE_OF = 32
FFN_DIM_MULTIPLIER = 1.0
NORM_EPS = 1e-5
ROPE_THETA = 10000.0
ATTN_DROPOUT = 0.0                 # TODO(synk): attention dropout (p>0) not implemented


def _ffn_hidden(dim: int) -> int:
    hidden = 4 * dim
    hidden = int(2 * hidden / 3)
    hidden = int(FFN_DIM_MULTIPLIER * hidden)
    hidden = MULTIPLE_OF * ((hidden + MULTIPLE_OF - 1) // MULTIPLE_OF)
    return hidden


FFN_HIDDEN = _ffn_hidden(DIM)                      # 192
FFN_PAD = 128 * ((FFN_HIDDEN + 127) // 128)        # 256 (lane-tile aligned)

# fused qkv layout (per q-head contiguous, k/v GQA-expanded host-side):
#   [ q_h0..q_h3 (4*16) | k_h0..k_h3 (4*16, kv head h//2) | v_h0..v_h3 (4*16) | pad ]
Q_OFF = 0
K_OFF = N_HEADS * HEAD_DIM                         # 64
V_OFF = 2 * N_HEADS * HEAD_DIM                     # 128
QKV_USED = 3 * N_HEADS * HEAD_DIM                  # 192
QKVW = 128 * ((QKV_USED + 127) // 128)             # 256 (lane-dense width)

# packed f32 consts slab layout (rows x QKVW)
ROW_COS = 0
ROW_SIN = BS
ROW_BIAS = 2 * BS
ROW_ATTN_NW = 3 * BS
ROW_FFN_NW = 3 * BS + 8
CONST_ROWS = ROW_FFN_NW + 8                        # 64
CONST_COLS = QKVW                                  # 256

# packed bf16 weights slab layout (rows x 512)
R_W13 = 0                                          # rows [0,64):   w1|w3 (padded), cols [0,512)
R_QKV = DIM                                        # rows [64,128): W1 cols [0,256), W2 cols [256,512)
R_W2 = 2 * DIM                                     # rows [128,384): w2 (padded), cols [0,64)
R_WO = R_W2                                        # rows [128,192): wo, cols [64,128)
WO_C0 = DIM
W_ROWS = R_W2 + FFN_PAD                            # 384
W_COLS = 2 * FFN_PAD                               # 512
assert W_COLS >= 2 * QKVW


# ---------------------------------- kernel ----------------------------------
def _rmsnorm(v, w):
    ms = jnp.mean(v * v, axis=-1, keepdims=True)
    return (v * jax.lax.rsqrt(ms + NORM_EPS)) * w


def transformer_block_kernel(x_ref, c_ref, w_ref, out_ref):
    x = x_ref[...]                                             # [BS, DIM] f32

    # packed constants (f32)
    cos = c_ref[ROW_COS:ROW_COS + BS, :]                       # [BS, QKVW]
    sin = c_ref[ROW_SIN:ROW_SIN + BS, :]                       # [BS, QKVW]
    bias = c_ref[ROW_BIAS:ROW_BIAS + BS, 0:BS]                 # [BS, BS] additive causal mask
    attn_nw = c_ref[ROW_ATTN_NW:ROW_ATTN_NW + 1, 0:DIM]        # [1, DIM]
    ffn_nw = c_ref[ROW_FFN_NW:ROW_FFN_NW + 1, 0:DIM]           # [1, DIM]

    # ---- attention_norm (RMSNorm, f32) ----
    xn = _rmsnorm(x, attn_nw)
    xnb = xn.astype(jnp.bfloat16)

    # ---- fused QKV projection + RoPE (no roll):
    #      W1 = normal fused projection (q pre-scaled by 1/sqrt(hd), k/v GQA-expanded),
    #      W2 = RoPE-partner projection (im/re swapped & sign-flipped columns).
    qkv1 = jnp.dot(xnb, w_ref[R_QKV:R_QKV + DIM, 0:QKVW],
                   preferred_element_type=jnp.float32)          # [BS, QKVW]
    qkv2 = jnp.dot(xnb, w_ref[R_QKV:R_QKV + DIM, QKVW:2 * QKVW],
                   preferred_element_type=jnp.float32)
    roped = (qkv1 * cos + qkv2 * sin).astype(jnp.bfloat16)      # [BS, QKVW] (v lanes: cos=1,sin=0)

    # ---- per-head causal attention; wo accumulated per-head (no concat) ----
    dn_T = (((1,), (1,)), ((), ()))                             # A @ B^T (contract last dims)
    acc = x                                                     # residual folded into accumulator
    for h in range(N_HEADS):                                    # unrolled
        q_h = roped[:, Q_OFF + h * HEAD_DIM:Q_OFF + (h + 1) * HEAD_DIM]
        k_h = roped[:, K_OFF + h * HEAD_DIM:K_OFF + (h + 1) * HEAD_DIM]
        v_h = roped[:, V_OFF + h * HEAD_DIM:V_OFF + (h + 1) * HEAD_DIM]

        s = jax.lax.dot_general(q_h, k_h, dn_T,
                                preferred_element_type=jnp.float32)   # [BS, BS], scale pre-folded
        s = s + bias                                                  # block-causal additive mask
        p = jnp.exp(s - jnp.max(s, axis=-1, keepdims=True))
        p = p / jnp.sum(p, axis=-1, keepdims=True)
        o_h = jnp.dot(p.astype(jnp.bfloat16), v_h,
                      preferred_element_type=jnp.float32)             # [BS, HEAD_DIM]

        wo_h = w_ref[R_WO + h * HEAD_DIM:R_WO + (h + 1) * HEAD_DIM, WO_C0:WO_C0 + DIM]
        acc = acc + jnp.dot(o_h.astype(jnp.bfloat16), wo_h,
                            preferred_element_type=jnp.float32)       # [BS, DIM]

    h_res = acc                                                  # x + attention(...)

    # ---- ffn_norm + fused SwiGLU: one [D, 2*FFN_PAD] matmul, 128-aligned g/u split ----
    hn = _rmsnorm(h_res, ffn_nw)
    hnb = hn.astype(jnp.bfloat16)
    gu = jnp.dot(hnb, w_ref[R_W13:R_W13 + DIM, :],
                 preferred_element_type=jnp.float32)             # [BS, 2*FFN_PAD]
    g = gu[:, :FFN_PAD]
    u = gu[:, FFN_PAD:]
    act = (g * jax.nn.sigmoid(g)) * u                            # silu(w1 x) * (w3 x); pad cols are 0
    ffn = jnp.dot(act.astype(jnp.bfloat16), w_ref[R_W2:R_W2 + FFN_PAD, 0:DIM],
                  preferred_element_type=jnp.float32)            # [BS, DIM]
    out_ref[...] = h_res + ffn


# ------------------------------- host wrapper -------------------------------
def transformer_block(x, kp):
    B, S, D = x.shape
    x2 = x.reshape(B * S, D)                                     # fold batch into matmul rows
    consts, weights = kp["consts"], kp["weights"]

    grid_spec = pltpu.PrefetchScalarGridSpec(
        num_scalar_prefetch=0,
        grid=(1,),                                               # single step; all operands resident
        in_specs=[
            pl.BlockSpec((B * S, D), lambda i: (0, 0)),
            pl.BlockSpec(consts.shape, lambda i: (0, 0)),
            pl.BlockSpec(weights.shape, lambda i: (0, 0)),
        ],
        out_specs=pl.BlockSpec((B * S, D), lambda i: (0, 0)),
    )
    out2 = pl.pallas_call(
        transformer_block_kernel,
        out_shape=jax.ShapeDtypeStruct((B * S, D), x.dtype),
        grid_spec=grid_spec,
        compiler_params=pltpu.CompilerParams(dimension_semantics=("arbitrary",)),
    )(x2, consts, weights)
    return out2.reshape(B, S, D)


# --------------------------- params / host-side repack ----------------------------
def init_params(key):
    ks = jax.random.split(key, 9)
    scale = 0.05

    def w(k, shape):
        return scale * jax.random.normal(k, shape, jnp.float32)

    return dict(
        wq=w(ks[0], (DIM, N_HEADS * HEAD_DIM)),
        wk=w(ks[1], (DIM, N_KV_HEADS * HEAD_DIM)),
        wv=w(ks[2], (DIM, N_KV_HEADS * HEAD_DIM)),
        wo=w(ks[3], (N_HEADS * HEAD_DIM, DIM)),
        w1=w(ks[4], (DIM, FFN_HIDDEN)),
        w2=w(ks[5], (FFN_HIDDEN, DIM)),
        w3=w(ks[6], (DIM, FFN_HIDDEN)),
        attn_norm=1.0 + 0.1 * jax.random.normal(ks[7], (1, DIM), jnp.float32),
        ffn_norm=1.0 + 0.1 * jax.random.normal(ks[8], (1, DIM), jnp.float32),
    )


def build_kernel_params(p, batch, seq):
    """Host-side repack:
       - W1: fused [q | k(GQA-expanded) | v(GQA-expanded) | 0] projection, q pre-scaled by 1/sqrt(hd)
       - W2: RoPE-partner projection (per-pair im/re swap with sign), v/pad columns zero
       - cos/sin tables matched to the fused lane layout (v lanes: cos=1, sin=0)
       - block-causal additive mask (0 / -1e30) over folded (batch*seq) rows
       - all small f32 constants packed into one slab; all bf16 weights packed into one slab."""
    wq, wk, wv, wo = (np.asarray(p[k], np.float32) for k in ("wq", "wk", "wv", "wo"))
    w1, w2, w3 = (np.asarray(p[k], np.float32) for k in ("w1", "w2", "w3"))
    attn_nw = np.asarray(p["attn_norm"], np.float32).reshape(1, DIM)
    ffn_nw = np.asarray(p["ffn_norm"], np.float32).reshape(1, DIM)
    scale = 1.0 / math.sqrt(HEAD_DIM)

    W1 = np.zeros((DIM, QKVW), np.float32)
    W2 = np.zeros((DIM, QKVW), np.float32)
    for h in range(N_HEADS):
        j = h // N_REP
        qcols = wq[:, h * HEAD_DIM:(h + 1) * HEAD_DIM] * scale        # softmax scale folded here
        kcols = wk[:, j * HEAD_DIM:(j + 1) * HEAD_DIM]
        vcols = wv[:, j * HEAD_DIM:(j + 1) * HEAD_DIM]
        W1[:, Q_OFF + h * HEAD_DIM:Q_OFF + (h + 1) * HEAD_DIM] = qcols
        W1[:, K_OFF + h * HEAD_DIM:K_OFF + (h + 1) * HEAD_DIM] = kcols
        W1[:, V_OFF + h * HEAD_DIM:V_OFF + (h + 1) * HEAD_DIM] = vcols
        # partner projection: dest even (re) <- -src odd (im);  dest odd (im) <- +src even (re)
        qsw = np.empty_like(qcols)
        qsw[:, 0::2] = -qcols[:, 1::2]
        qsw[:, 1::2] = qcols[:, 0::2]
        ksw = np.empty_like(kcols)
        ksw[:, 0::2] = -kcols[:, 1::2]
        ksw[:, 1::2] = kcols[:, 0::2]
        W2[:, Q_OFF + h * HEAD_DIM:Q_OFF + (h + 1) * HEAD_DIM] = qsw
        W2[:, K_OFF + h * HEAD_DIM:K_OFF + (h + 1) * HEAD_DIM] = ksw
        # v / pad lanes of W2 stay zero

    # RoPE tables in the fused lane layout (interleaved re/im within each head, like the ref)
    inv = 1.0 / (ROPE_THETA ** (np.arange(0, HEAD_DIM, 2, dtype=np.float32) / HEAD_DIM))
    ang = np.outer(np.arange(seq, dtype=np.float32), inv)             # [S, HD2]
    cos_h = np.repeat(np.cos(ang).astype(np.float32), 2, axis=1)      # [S, HEAD_DIM]
    sin_h = np.repeat(np.sin(ang).astype(np.float32), 2, axis=1)
    cos_row = np.zeros((seq, QKVW), np.float32)
    sin_row = np.zeros((seq, QKVW), np.float32)
    for h in range(N_HEADS):
        cos_row[:, Q_OFF + h * HEAD_DIM:Q_OFF + (h + 1) * HEAD_DIM] = cos_h
        cos_row[:, K_OFF + h * HEAD_DIM:K_OFF + (h + 1) * HEAD_DIM] = cos_h
        sin_row[:, Q_OFF + h * HEAD_DIM:Q_OFF + (h + 1) * HEAD_DIM] = sin_h
        sin_row[:, K_OFF + h * HEAD_DIM:K_OFF + (h + 1) * HEAD_DIM] = sin_h
    cos_row[:, V_OFF:V_OFF + N_HEADS * HEAD_DIM] = 1.0                # v passes through
    cos_full = np.tile(cos_row, (batch, 1))                           # [BS, QKVW]
    sin_full = np.tile(sin_row, (batch, 1))

    # block-causal additive mask over folded rows (0 allowed / -1e30 masked; no -inf => no NaN risk)
    bs = batch * seq
    r = np.arange(bs)[:, None]
    c = np.arange(bs)[None, :]
    allowed = (r // seq == c // seq) & (c % seq <= r % seq)
    bias = np.where(allowed, 0.0, -1e30).astype(np.float32)

    # ---- pack f32 constants into one slab ----
    consts = np.zeros((CONST_ROWS, CONST_COLS), np.float32)
    consts[ROW_COS:ROW_COS + bs] = cos_full
    consts[ROW_SIN:ROW_SIN + bs] = sin_full
    consts[ROW_BIAS:ROW_BIAS + bs, 0:bs] = bias
    consts[ROW_ATTN_NW, 0:DIM] = attn_nw[0]
    consts[ROW_FFN_NW, 0:DIM] = ffn_nw[0]

    # ---- fused + zero-padded SwiGLU weights ----
    w1p = np.zeros((DIM, FFN_PAD), np.float32); w1p[:, :FFN_HIDDEN] = w1
    w3p = np.zeros((DIM, FFN_PAD), np.float32); w3p[:, :FFN_HIDDEN] = w3
    w13 = np.concatenate([w1p, w3p], axis=1)                          # [DIM, 2*FFN_PAD]
    w2p = np.zeros((FFN_PAD, DIM), np.float32); w2p[:FFN_HIDDEN] = w2

    # ---- pack all weights into one bf16 slab ----
    weights = np.zeros((W_ROWS, W_COLS), np.float32)
    weights[R_W13:R_W13 + DIM, :] = w13
    weights[R_QKV:R_QKV + DIM, 0:QKVW] = W1
    weights[R_QKV:R_QKV + DIM, QKVW:2 * QKVW] = W2
    weights[R_W2:R_W2 + FFN_PAD, 0:DIM] = w2p
    weights[R_WO:R_WO + DIM, WO_C0:WO_C0 + DIM] = wo

    return dict(consts=jnp.asarray(consts, jnp.float32),
                weights=jnp.asarray(weights, jnp.bfloat16))


def rope_tables(seq):
    inv = 1.0 / (ROPE_THETA ** (np.arange(0, HEAD_DIM, 2, dtype=np.float32) / HEAD_DIM))
    ang = np.outer(np.arange(seq, dtype=np.float32), inv)             # [S, HD2]
    return jnp.asarray(np.cos(ang), jnp.float32), jnp.asarray(np.sin(ang), jnp.float32)


# ------------------------------ pure-JAX reference ------------------------------
def ref_transformer_block(x, cos, sin, p):
    B, S, D = x.shape

    def rms(v, w):
        ms = jnp.mean(v * v, axis=-1, keepdims=True)
        return v * jax.lax.rsqrt(ms + NORM_EPS) * w

    xn = rms(x, p["attn_norm"])
    q = (xn @ p["wq"]).reshape(B, S, N_HEADS, HEAD_DIM)
    k = (xn @ p["wk"]).reshape(B, S, N_KV_HEADS, HEAD_DIM)
    v = (xn @ p["wv"]).reshape(B, S, N_KV_HEADS, HEAD_DIM)

    def rope(t):  # interleaved (complex) formulation, like apply_rotary_emb
        tr = t.reshape(t.shape[:-1] + (HD2, 2))
        a, b = tr[..., 0], tr[..., 1]
        c = cos[None, :, None, :]
        s = sin[None, :, None, :]
        return jnp.stack([a * c - b * s, a * s + b * c], axis=-1).reshape(t.shape)

    q, k = rope(q), rope(k)
    k = jnp.repeat(k, N_REP, axis=2)
    v = jnp.repeat(v, N_REP, axis=2)
    q, k, v = (z.transpose(0, 2, 1, 3) for z in (q, k, v))
    scores = jnp.einsum("bhqd,bhkd->bhqk", q, k) / math.sqrt(HEAD_DIM)
    mask = np.tril(np.ones((S, S), dtype=bool))
    scores = jnp.where(mask, scores, -jnp.inf)
    attn = jax.nn.softmax(scores, axis=-1)
    y = jnp.einsum("bhqk,bhkd->bhqd", attn, v).transpose(0, 2, 1, 3).reshape(B, S, D)
    h = x + y @ p["wo"]
    hn = rms(h, p["ffn_norm"])
    ffn = (jax.nn.silu(hn @ p["w1"]) * (hn @ p["w3"])) @ p["w2"]
    return h + ffn


# ------------------------------------ main ------------------------------------
if __name__ == "__main__":
    key = jax.random.PRNGKey(0)
    kx, kp = jax.random.split(key)
    x = jax.random.normal(kx, (BATCH, SEQ, DIM), jnp.float32)
    params = init_params(kp)
    kparams = build_kernel_params(params, BATCH, SEQ)

    out = transformer_block(x, kparams)
    out = jax.block_until_ready(out)

    cos, sin = rope_tables(SEQ)
    ref = ref_transformer_block(x, cos, sin, params)
    assert out.shape == (BATCH, SEQ, DIM)
    # bf16 MXU operands (f32 accumulation) vs f32 reference -> relaxed tolerance
    np.testing.assert_allclose(np.asarray(out), np.asarray(ref), rtol=3e-2, atol=3e-2)
    print("KERNEL_OK")
</pallas_src>

<mosaic_0001>
module attributes {stable_mosaic.version = 11 : i64} {
  func.func @transformer_block_kernel(%arg0: i32, %arg1: memref<16x64xf32, #tpu.memory_space<vmem>>, %arg2: memref<64x256xf32, #tpu.memory_space<vmem>>, %arg3: memref<384x512xbf16, #tpu.memory_space<vmem>>, %arg4: memref<16x64xf32, #tpu.memory_space<vmem>>) attributes {dimension_semantics = [#tpu.dimension_semantics<arbitrary>], iteration_bounds = array<i64: 1>, scalar_prefetch = 0 : i64, scratch_operands = 0 : i64, tpu.core_type = #tpu.core_type<tc>, window_params = [{pipeline_mode = #tpu.pipeline_mode<synchronous>, transform_indices = @transform_0, window_bounds = array<i64: 16, 64>}, {pipeline_mode = #tpu.pipeline_mode<synchronous>, transform_indices = @transform_1, window_bounds = array<i64: 64, 256>}, {pipeline_mode = #tpu.pipeline_mode<synchronous>, transform_indices = @transform_2, window_bounds = array<i64: 384, 512>}, {pipeline_mode = #tpu.pipeline_mode<synchronous>, transform_indices = @transform_3, window_bounds = array<i64: 16, 64>}]} {
    %c0 = arith.constant 0 : index
    %c0_0 = arith.constant 0 : index
    %0 = vector.load %arg1[%c0, %c0_0] : memref<16x64xf32, #tpu.memory_space<vmem>>, vector<16x64xf32>
    %c0_1 = arith.constant 0 : index
    %c0_2 = arith.constant 0 : index
    %1 = vector.load %arg2[%c0_1, %c0_2] : memref<64x256xf32, #tpu.memory_space<vmem>>, vector<16x256xf32>
    %c16 = arith.constant 16 : index
    %c0_3 = arith.constant 0 : index
    %2 = vector.load %arg2[%c16, %c0_3] : memref<64x256xf32, #tpu.memory_space<vmem>>, vector<16x256xf32>
    %c32 = arith.constant 32 : index
    %c0_4 = arith.constant 0 : index
    %3 = vector.load %arg2[%c32, %c0_4] : memref<64x256xf32, #tpu.memory_space<vmem>>, vector<16x16xf32>
    %c48 = arith.constant 48 : index
    %c0_5 = arith.constant 0 : index
    %4 = vector.load %arg2[%c48, %c0_5] : memref<64x256xf32, #tpu.memory_space<vmem>>, vector<1x64xf32>
    %c56 = arith.constant 56 : index
    %c0_6 = arith.constant 0 : index
    %5 = vector.load %arg2[%c56, %c0_6] : memref<64x256xf32, #tpu.memory_space<vmem>>, vector<1x64xf32>
    %6 = arith.mulf %0, %0 : vector<16x64xf32>
    %cst = arith.constant dense<0.000000e+00> : vector<16xf32>
    %7 = vector.multi_reduction <add>, %6, %cst [1] : vector<16x64xf32> to vector<16xf32>
    %8 = vector.shape_cast %7 : vector<16xf32> to vector<16x1xf32>
    %cst_7 = arith.constant 6.400000e+01 : f32
    %9 = vector.broadcast %cst_7 : f32 to vector<16x1xf32>
    %10 = arith.divf %8, %9 : vector<16x1xf32>
    %cst_8 = arith.constant 9.99999974E-6 : f32
    %11 = vector.broadcast %cst_8 : f32 to vector<16x1xf32>
    %12 = arith.addf %10, %11 : vector<16x1xf32>
    %13 = math.rsqrt %12 : vector<16x1xf32>
    %14 = vector.broadcast %13 : vector<16x1xf32> to vector<16x64xf32>
    %15 = arith.mulf %0, %14 : vector<16x64xf32>
    %16 = vector.broadcast %4 : vector<1x64xf32> to vector<16x64xf32>
    %17 = arith.mulf %15, %16 : vector<16x64xf32>
    %18 = arith.truncf %17 : vector<16x64xf32> to vector<16x64xbf16>
    %c64 = arith.constant 64 : index
    %c0_9 = arith.constant 0 : index
    %19 = vector.load %arg3[%c64, %c0_9] : memref<384x512xbf16, #tpu.memory_space<vmem>>, vector<64x256xbf16>
    %cst_10 = arith.constant dense<0.000000e+00> : vector<16x256xf32>
    %20 = tpu.matmul %18, %19, %cst_10 {dimension_numbers = #tpu.dot_dimension_numbers<[1], [0], [0], [1], [0, 0, 1, 1], [], []>} : vector<16x64xbf16>, vector<64x256xbf16>, vector<16x256xf32> -> vector<16x256xf32>
    %c64_11 = arith.constant 64 : index
    %c256 = arith.constant 256 : index
    %21 = vector.load %arg3[%c64_11, %c256] : memref<384x512xbf16, #tpu.memory_space<vmem>>, vector<64x256xbf16>
    %cst_12 = arith.constant dense<0.000000e+00> : vector<16x256xf32>
    %22 = tpu.matmul %18, %21, %cst_12 {dimension_numbers = #tpu.dot_dimension_numbers<[1], [0], [0], [1], [0, 0, 1, 1], [], []>} : vector<16x64xbf16>, vector<64x256xbf16>, vector<16x256xf32> -> vector<16x256xf32>
    %23 = arith.mulf %20, %1 : vector<16x256xf32>
    %24 = arith.mulf %22, %2 : vector<16x256xf32>
    %25 = arith.addf %23, %24 : vector<16x256xf32>
    %26 = arith.truncf %25 : vector<16x256xf32> to vector<16x256xbf16>
    %27 = vector.extract_strided_slice %26 {offsets = [0, 0], sizes = [16, 16], strides = [1, 1]} : vector<16x256xbf16> to vector<16x16xbf16>
    %28 = vector.extract_strided_slice %26 {offsets = [0, 64], sizes = [16, 16], strides = [1, 1]} : vector<16x256xbf16> to vector<16x16xbf16>
    %29 = vector.extract_strided_slice %26 {offsets = [0, 128], sizes = [16, 16], strides = [1, 1]} : vector<16x256xbf16> to vector<16x16xbf16>
    %cst_13 = arith.constant dense<0.000000e+00> : vector<16x16xf32>
    %30 = tpu.matmul %27, %28, %cst_13 {dimension_numbers = #tpu.dot_dimension_numbers<[1], [1], [0], [0], [0, 0, 1, 0], [], []>} : vector<16x16xbf16>, vector<16x16xbf16>, vector<16x16xf32> -> vector<16x16xf32>
    %31 = arith.addf %30, %3 : vector<16x16xf32>
    %cst_14 = arith.constant dense<0xFF800000> : vector<16xf32>
    %32 = vector.multi_reduction <maximumf>, %31, %cst_14 [1] : vector<16x16xf32> to vector<16xf32>
    %33 = vector.shape_cast %32 : vector<16xf32> to vector<16x1xf32>
    %34 = vector.broadcast %33 : vector<16x1xf32> to vector<16x16xf32>
    %35 = arith.subf %31, %34 : vector<16x16xf32>
    %36 = math.exp %35 : vector<16x16xf32>
    %cst_15 = arith.constant dense<0.000000e+00> : vector<16xf32>
    %37 = vector.multi_reduction <add>, %36, %cst_15 [1] : vector<16x16xf32> to vector<16xf32>
    %38 = vector.shape_cast %37 : vector<16xf32> to vector<16x1xf32>
    %39 = vector.broadcast %38 : vector<16x1xf32> to vector<16x16xf32>
    %40 = arith.divf %36, %39 : vector<16x16xf32>
    %41 = arith.truncf %40 : vector<16x16xf32> to vector<16x16xbf16>
    %cst_16 = arith.constant dense<0.000000e+00> : vector<16x16xf32>
    %42 = tpu.matmul %41, %29, %cst_16 {dimension_numbers = #tpu.dot_dimension_numbers<[1], [0], [0], [1], [0, 0, 1, 1], [], []>} : vector<16x16xbf16>, vector<16x16xbf16>, vector<16x16xf32> -> vector<16x16xf32>
    %c128 = arith.constant 128 : index
    %c64_17 = arith.constant 64 : index
    %43 = vector.load %arg3[%c128, %c64_17] : memref<384x512xbf16, #tpu.memory_space<vmem>>, vector<16x64xbf16>
    %44 = arith.truncf %42 : vector<16x16xf32> to vector<16x16xbf16>
    %cst_18 = arith.constant dense<0.000000e+00> : vector<16x64xf32>
    %45 = tpu.matmul %44, %43, %cst_18 {dimension_numbers = #tpu.dot_dimension_numbers<[1], [0], [0], [1], [0, 0, 1, 1], [], []>} : vector<16x16xbf16>, vector<16x64xbf16>, vector<16x64xf32> -> vector<16x64xf32>
    %46 = arith.addf %0, %45 : vector<16x64xf32>
    %47 = vector.extract_strided_slice %26 {offsets = [0, 16], sizes = [16, 16], strides = [1, 1]} : vector<16x256xbf16> to vector<16x16xbf16>
    %48 = vector.extract_strided_slice %26 {offsets = [0, 80], sizes = [16, 16], strides = [1, 1]} : vector<16x256xbf16> to vector<16x16xbf16>
    %49 = vector.extract_strided_slice %26 {offsets = [0, 144], sizes = [16, 16], strides = [1, 1]} : vector<16x256xbf16> to vector<16x16xbf16>
    %cst_19 = arith.constant dense<0.000000e+00> : vector<16x16xf32>
    %50 = tpu.matmul %47, %48, %cst_19 {dimension_numbers = #tpu.dot_dimension_numbers<[1], [1], [0], [0], [0, 0, 1, 0], [], []>} : vector<16x16xbf16>, vector<16x16xbf16>, vector<16x16xf32> -> vector<16x16xf32>
    %51 = arith.addf %50, %3 : vector<16x16xf32>
    %cst_20 = arith.constant dense<0xFF800000> : vector<16xf32>
    %52 = vector.multi_reduction <maximumf>, %51, %cst_20 [1] : vector<16x16xf32> to vector<16xf32>
    %53 = vector.shape_cast %52 : vector<16xf32> to vector<16x1xf32>
    %54 = vector.broadcast %53 : vector<16x1xf32> to vector<16x16xf32>
    %55 = arith.subf %51, %54 : vector<16x16xf32>
    %56 = math.exp %55 : vector<16x16xf32>
    %cst_21 = arith.constant dense<0.000000e+00> : vector<16xf32>
    %57 = vector.multi_reduction <add>, %56, %cst_21 [1] : vector<16x16xf32> to vector<16xf32>
    %58 = vector.shape_cast %57 : vector<16xf32> to vector<16x1xf32>
    %59 = vector.broadcast %58 : vector<16x1xf32> to vector<16x16xf32>
    %60 = arith.divf %56, %59 : vector<16x16xf32>
    %61 = arith.truncf %60 : vector<16x16xf32> to vector<16x16xbf16>
    %cst_22 = arith.constant dense<0.000000e+00> : vector<16x16xf32>
    %62 = tpu.matmul %61, %49, %cst_22 {dimension_numbers = #tpu.dot_dimension_numbers<[1], [0], [0], [1], [0, 0, 1, 1], [], []>} : vector<16x16xbf16>, vector<16x16xbf16>, vector<16x16xf32> -> vector<16x16xf32>
    %c144 = arith.constant 144 : index
    %c64_23 = arith.constant 64 : index
    %63 = vector.load %arg3[%c144, %c64_23] : memref<384x512xbf16, #tpu.memory_space<vmem>>, vector<16x64xbf16>
    %64 = arith.truncf %62 : vector<16x16xf32> to vector<16x16xbf16>
    %cst_24 = arith.constant dense<0.000000e+00> : vector<16x64xf32>
    %65 = tpu.matmul %64, %63, %cst_24 {dimension_numbers = #tpu.dot_dimension_numbers<[1], [0], [0], [1], [0, 0, 1, 1], [], []>} : vector<16x16xbf16>, vector<16x64xbf16>, vector<16x64xf32> -> vector<16x64xf32>
    %66 = arith.addf %46, %65 : vector<16x64xf32>
    %67 = vector.extract_strided_slice %26 {offsets = [0, 32], sizes = [16, 16], strides = [1, 1]} : vector<16x256xbf16> to vector<16x16xbf16>
    %68 = vector.extract_strided_slice %26 {offsets = [0, 96], sizes = [16, 16], strides = [1, 1]} : vector<16x256xbf16> to vector<16x16xbf16>
    %69 = vector.extract_strided_slice %26 {offsets = [0, 160], sizes = [16, 16], strides = [1, 1]} : vector<16x256xbf16> to vector<16x16xbf16>
    %cst_25 = arith.constant dense<0.000000e+00> : vector<16x16xf32>
    %70 = tpu.matmul %67, %68, %cst_25 {dimension_numbers = #tpu.dot_dimension_numbers<[1], [1], [0], [0], [0, 0, 1, 0], [], []>} : vector<16x16xbf16>, vector<16x16xbf16>, vector<16x16xf32> -> vector<16x16xf32>
    %71 = arith.addf %70, %3 : vector<16x16xf32>
    %cst_26 = arith.constant dense<0xFF800000> : vector<16xf32>
    %72 = vector.multi_reduction <maximumf>, %71, %cst_26 [1] : vector<16x16xf32> to vector<16xf32>
    %73 = vector.shape_cast %72 : vector<16xf32> to vector<16x1xf32>
    %74 = vector.broadcast %73 : vector<16x1xf32> to vector<16x16xf32>
    %75 = arith.subf %71, %74 : vector<16x16xf32>
    %76 = math.exp %75 : vector<16x16xf32>
    %cst_27 = arith.constant dense<0.000000e+00> : vector<16xf32>
    %77 = vector.multi_reduction <add>, %76, %cst_27 [1] : vector<16x16xf32> to vector<16xf32>
    %78 = vector.shape_cast %77 : vector<16xf32> to vector<16x1xf32>
    %79 = vector.broadcast %78 : vector<16x1xf32> to vector<16x16xf32>
    %80 = arith.divf %76, %79 : vector<16x16xf32>
    %81 = arith.truncf %80 : vector<16x16xf32> to vector<16x16xbf16>
    %cst_28 = arith.constant dense<0.000000e+00> : vector<16x16xf32>
    %82 = tpu.matmul %81, %69, %cst_28 {dimension_numbers = #tpu.dot_dimension_numbers<[1], [0], [0], [1], [0, 0, 1, 1], [], []>} : vector<16x16xbf16>, vector<16x16xbf16>, vector<16x16xf32> -> vector<16x16xf32>
    %c160 = arith.constant 160 : index
    %c64_29 = arith.constant 64 : index
    %83 = vector.load %arg3[%c160, %c64_29] : memref<384x512xbf16, #tpu.memory_space<vmem>>, vector<16x64xbf16>
    %84 = arith.truncf %82 : vector<16x16xf32> to vector<16x16xbf16>
    %cst_30 = arith.constant dense<0.000000e+00> : vector<16x64xf32>
    %85 = tpu.matmul %84, %83, %cst_30 {dimension_numbers = #tpu.dot_dimension_numbers<[1], [0], [0], [1], [0, 0, 1, 1], [], []>} : vector<16x16xbf16>, vector<16x64xbf16>, vector<16x64xf32> -> vector<16x64xf32>
    %86 = arith.addf %66, %85 : vector<16x64xf32>
    %87 = vector.extract_strided_slice %26 {offsets = [0, 48], sizes = [16, 16], strides = [1, 1]} : vector<16x256xbf16> to vector<16x16xbf16>
    %88 = vector.extract_strided_slice %26 {offsets = [0, 112], sizes = [16, 16], strides = [1, 1]} : vector<16x256xbf16> to vector<16x16xbf16>
    %89 = vector.extract_strided_slice %26 {offsets = [0, 176], sizes = [16, 16], strides = [1, 1]} : vector<16x256xbf16> to vector<16x16xbf16>
    %cst_31 = arith.constant dense<0.000000e+00> : vector<16x16xf32>
    %90 = tpu.matmul %87, %88, %cst_31 {dimension_numbers = #tpu.dot_dimension_numbers<[1], [1], [0], [0], [0, 0, 1, 0], [], []>} : vector<16x16xbf16>, vector<16x16xbf16>, vector<16x16xf32> -> vector<16x16xf32>
    %91 = arith.addf %90, %3 : vector<16x16xf32>
    %cst_32 = arith.constant dense<0xFF800000> : vector<16xf32>
    %92 = vector.multi_reduction <maximumf>, %91, %cst_32 [1] : vector<16x16xf32> to vector<16xf32>
    %93 = vector.shape_cast %92 : vector<16xf32> to vector<16x1xf32>
    %94 = vector.broadcast %93 : vector<16x1xf32> to vector<16x16xf32>
    %95 = arith.subf %91, %94 : vector<16x16xf32>
    %96 = math.exp %95 : vector<16x16xf32>
    %cst_33 = arith.constant dense<0.000000e+00> : vector<16xf32>
    %97 = vector.multi_reduction <add>, %96, %cst_33 [1] : vector<16x16xf32> to vector<16xf32>
    %98 = vector.shape_cast %97 : vector<16xf32> to vector<16x1xf32>
    %99 = vector.broadcast %98 : vector<16x1xf32> to vector<16x16xf32>
    %100 = arith.divf %96, %99 : vector<16x16xf32>
    %101 = arith.truncf %100 : vector<16x16xf32> to vector<16x16xbf16>
    %cst_34 = arith.constant dense<0.000000e+00> : vector<16x16xf32>
    %102 = tpu.matmul %101, %89, %cst_34 {dimension_numbers = #tpu.dot_dimension_numbers<[1], [0], [0], [1], [0, 0, 1, 1], [], []>} : vector<16x16xbf16>, vector<16x16xbf16>, vector<16x16xf32> -> vector<16x16xf32>
    %c176 = arith.constant 176 : index
    %c64_35 = arith.constant 64 : index
    %103 = vector.load %arg3[%c176, %c64_35] : memref<384x512xbf16, #tpu.memory_space<vmem>>, vector<16x64xbf16>
    %104 = arith.truncf %102 : vector<16x16xf32> to vector<16x16xbf16>
    %cst_36 = arith.constant dense<0.000000e+00> : vector<16x64xf32>
    %105 = tpu.matmul %104, %103, %cst_36 {dimension_numbers = #tpu.dot_dimension_numbers<[1], [0], [0], [1], [0, 0, 1, 1], [], []>} : vector<16x16xbf16>, vector<16x64xbf16>, vector<16x64xf32> -> vector<16x64xf32>
    %106 = arith.addf %86, %105 : vector<16x64xf32>
    %107 = arith.mulf %106, %106 : vector<16x64xf32>
    %cst_37 = arith.constant dense<0.000000e+00> : vector<16xf32>
    %108 = vector.multi_reduction <add>, %107, %cst_37 [1] : vector<16x64xf32> to vector<16xf32>
    %109 = vector.shape_cast %108 : vector<16xf32> to vector<16x1xf32>
    %cst_38 = arith.constant 6.400000e+01 : f32
    %110 = vector.broadcast %cst_38 : f32 to vector<16x1xf32>
    %111 = arith.divf %109, %110 : vector<16x1xf32>
    %cst_39 = arith.constant 9.99999974E-6 : f32
    %112 = vector.broadcast %cst_39 : f32 to vector<16x1xf32>
    %113 = arith.addf %111, %112 : vector<16x1xf32>
    %114 = math.rsqrt %113 : vector<16x1xf32>
    %115 = vector.broadcast %114 : vector<16x1xf32> to vector<16x64xf32>
    %116 = arith.mulf %106, %115 : vector<16x64xf32>
    %117 = vector.broadcast %5 : vector<1x64xf32> to vector<16x64xf32>
    %118 = arith.mulf %116, %117 : vector<16x64xf32>
    %119 = arith.truncf %118 : vector<16x64xf32> to vector<16x64xbf16>
    %c0_40 = arith.constant 0 : index
    %c0_41 = arith.constant 0 : index
    %120 = vector.load %arg3[%c0_40, %c0_41] : memref<384x512xbf16, #tpu.memory_space<vmem>>, vector<64x512xbf16>
    %cst_42 = arith.constant dense<0.000000e+00> : vector<16x512xf32>
    %121 = tpu.matmul %119, %120, %cst_42 {dimension_numbers = #tpu.dot_dimension_numbers<[1], [0], [0], [1], [0, 0, 1, 1], [], []>} : vector<16x64xbf16>, vector<64x512xbf16>, vector<16x512xf32> -> vector<16x512xf32>
    %122 = vector.extract_strided_slice %121 {offsets = [0, 0], sizes = [16, 256], strides = [1, 1]} : vector<16x512xf32> to vector<16x256xf32>
    %123 = vector.extract_strided_slice %121 {offsets = [0, 256], sizes = [16, 256], strides = [1, 1]} : vector<16x512xf32> to vector<16x256xf32>
    %124 = arith.negf %122 : vector<16x256xf32>
    %125 = math.exp %124 : vector<16x256xf32>
    %cst_43 = arith.constant 1.000000e+00 : f32
    %126 = vector.broadcast %cst_43 : f32 to vector<16x256xf32>
    %127 = arith.addf %126, %125 : vector<16x256xf32>
    %128 = arith.divf %126, %127 : vector<16x256xf32>
    %129 = arith.mulf %122, %128 : vector<16x256xf32>
    %130 = arith.mulf %129, %123 : vector<16x256xf32>
    %131 = arith.truncf %130 : vector<16x256xf32> to vector<16x256xbf16>
    %c128_44 = arith.constant 128 : index
    %c0_45 = arith.constant 0 : index
    %132 = vector.load %arg3[%c128_44, %c0_45] : memref<384x512xbf16, #tpu.memory_space<vmem>>, vector<256x64xbf16>
    %cst_46 = arith.constant dense<0.000000e+00> : vector<16x64xf32>
    %133 = tpu.matmul %131, %132, %cst_46 {dimension_numbers = #tpu.dot_dimension_numbers<[1], [0], [0], [1], [0, 0, 1, 1], [], []>} : vector<16x256xbf16>, vector<256x64xbf16>, vector<16x64xf32> -> vector<16x64xf32>
    %134 = arith.addf %106, %133 : vector<16x64xf32>
    %c0_47 = arith.constant 0 : index
    %c0_48 = arith.constant 0 : index
    %135 = vector.load %arg4[%c0_47, %c0_48] : memref<16x64xf32, #tpu.memory_space<vmem>>, vector<16x64xf32>
    tpu.vector_store %arg4[%c0_47, %c0_48], %134 {strides = array<i32>} : memref<16x64xf32, #tpu.memory_space<vmem>>, vector<16x64xf32>,
    return
  }
  func.func @transform_0(%arg0: i32) -> (i32, i32) {
    %c0_i32 = arith.constant 0 : i32
    %c0_i32_0 = arith.constant 0 : i32
    %c0_i32_1 = arith.constant 0 : i32
    return %c0_i32, %c0_i32_0 : i32, i32
  }
  func.func @transform_1(%arg0: i32) -> (i32, i32) {
    %c0_i32 = arith.constant 0 : i32
    %c0_i32_0 = arith.constant 0 : i32
    %c0_i32_1 = arith.constant 0 : i32
    return %c0_i32, %c0_i32_0 : i32, i32
  }
  func.func @transform_2(%arg0: i32) -> (i32, i32) {
    %c0_i32 = arith.constant 0 : i32
    %c0_i32_0 = arith.constant 0 : i32
    %c0_i32_1 = arith.constant 0 : i32
    return %c0_i32, %c0_i32_0 : i32, i32
  }
  func.func @transform_3(%arg0: i32) -> (i32, i32) {
    %c0_i32 = arith.constant 0 : i32
    %c0_i32_0 = arith.constant 0 : i32
    %c0_i32_1 = arith.constant 0 : i32
    return %c0_i32, %c0_i32_0 : i32, i32
  }
}

</mosaic_0001>

<llo_original>
// kernel: tpu_custom_call.1
$region0: #{tpu_custom_call.1}
  #allocation0 [shape = 'u32[]', space=smem, size = 0x4, offset = 0x4, fixed_abs, tag = 'smem constant byte address 0x4 - core index']
  #allocation1 [shape = 'u32[144,128]{1,0:T(1,128)}', space=vmem, size = 0x12000, scoped, tag = 'internal scratch']
  %s0 = inlined_call_operand.hbm [shape: f32[16,64], index: 0, kind: input, shape index: {}]
  %s1 = inlined_call_operand.hbm [shape: f32[64,256], index: 1, kind: input, shape index: {}]
  %s2 = inlined_call_operand.hbm [shape: bf16[384,512], index: 2, kind: input, shape index: {}]
  %s3 = inlined_call_operand.hbm [shape: f32[16,64], index: 3, kind: output, shape index: {}]
  %s4 = sld [smem:[#allocation0]]
  $region34: #{tpu_custom_call.1} parent=0
    _
  %s6 = ssub.s32 1, %s4
  %s7 = scalar_select 0, %s6, %s4
  $region1: #{tpu_custom_call.1} parent=0
    #allocation2 [shape = 'u8[8192]{0}', space=vmem, size = 0x2000, scoped, tag = 'input window, operand 0, single buffered']
    #allocation3 [shape = 's32[1]{0}', space=sflag, size = 0x4, scoped, tag = 'scoped memory for tpu_custom_call.1']
    #allocation4 [shape = 's32[1]{0}', space=sflag, size = 0x4, scoped, tag = 'scoped memory for tpu_custom_call.1']
    #allocation5 [shape = 'u8[65536]{0}', space=vmem, size = 0x10000, scoped, tag = 'input window, operand 1, single buffered']
    #allocation6 [shape = 's32[1]{0}', space=sflag, size = 0x4, scoped, tag = 'scoped memory for tpu_custom_call.1']
    #allocation7 [shape = 'u8[393216]{0}', space=vmem, size = 0x60000, scoped, tag = 'input window, operand 2, single buffered']
    #allocation8 [shape = 'u8[8192]{0}', space=vmem, size = 0x2000, scoped, tag = 'output window, operand 0, single buffered']
    %8 = vsyncpa [#allocation3], 0
    %9 = vsyncpa [#allocation6], 0
    %10 = vsyncpa [#allocation4], 0
    // Predicated region
    $region2: #{tpu_custom_call.1} parent=1 // pred_check
      _
    $region3: #{tpu_custom_call.1} parent=1 // pred_check_branch
      %12 = sbr.rel (0) target = $region5
    $region4: #{tpu_custom_call.1} parent=1 // pred_region
      %s14 = ssub.s32 256, 256
      %15 = vsyncadd [#allocation3], %s14
      %s16 = sshll.u32 [#allocation2], 4
      %s17 = int_to_ptr.vmem [resolvable:$true] %s16
      %22 = dma.hbm_to_vmem [thread:$0]  %s0, 256, %s17, [#allocation3], 128, 128, 8
    $region5: #{tpu_custom_call.1} parent=1 // pred_fallthru
      _
    // Predicated region
    $region6: #{tpu_custom_call.1} parent=1 // pred_check
      _
    $region7: #{tpu_custom_call.1} parent=1 // pred_check_branch
      %24 = sbr.rel (0) target = $region9
    $region8: #{tpu_custom_call.1} parent=1 // pred_region
      %s26 = ssub.s32 2048, 2048
      %27 = vsyncadd [#allocation6], %s26
      %s28 = sshll.u32 [#allocation5], 4
      %s29 = int_to_ptr.vmem [resolvable:$true] %s28
      %34 = dma.hbm_to_vmem [thread:$0]  %s1, 2048, %s29, [#allocation6], 256, 256, 16
    $region9: #{tpu_custom_call.1} parent=1 // pred_fallthru
      _
    // Predicated region
    $region10: #{tpu_custom_call.1} parent=1 // pred_check
      _
    $region11: #{tpu_custom_call.1} parent=1 // pred_check_branch
      %36 = sbr.rel (0) target = $region13
    $region12: #{tpu_custom_call.1} parent=1 // pred_region
      %s38 = ssub.s32 12288, 12288
      %39 = vsyncadd [#allocation6], %s38
      %s40 = sshll.u32 [#allocation7], 4
      %s41 = int_to_ptr.vmem [resolvable:$true] %s40
      %46 = dma.hbm_to_vmem [thread:$0]  %s2, 12288, %s41, [#allocation6], 256, 256, 16
    $region13: #{tpu_custom_call.1} parent=1 // pred_fallthru
      _
    // Predicated region
    $region14: #{tpu_custom_call.1} parent=1 // pred_check
      _
    $region15: #{tpu_custom_call.1} parent=1 // pred_check_branch
      %48 = sbr.rel (0) target = $region17
    $region16: #{tpu_custom_call.1} parent=1 // pred_region
      %49 = dma.done [#allocation3], 256
    $region17: #{tpu_custom_call.1} parent=1 // pred_fallthru
      _
    // Predicated region
    $region18: #{tpu_custom_call.1} parent=1 // pred_check
      _
    $region19: #{tpu_custom_call.1} parent=1 // pred_check_branch
      %51 = sbr.rel (0) target = $region21
    $region20: #{tpu_custom_call.1} parent=1 // pred_region
      %52 = dma.done [#allocation6], 2048
    $region21: #{tpu_custom_call.1} parent=1 // pred_fallthru
      _
    // Predicated region
    $region22: #{tpu_custom_call.1} parent=1 // pred_check
      _
    $region23: #{tpu_custom_call.1} parent=1 // pred_check_branch
      %54 = sbr.rel (0) target = $region25
    $region24: #{tpu_custom_call.1} parent=1 // pred_region
      %55 = dma.done [#allocation6], 12288
    $region25: #{tpu_custom_call.1} parent=1 // pred_fallthru
      _
    %v57 = vld [vmem:[#allocation2] sm:$0xff]
    %v58 = vld [vmem:[#allocation2 + $0x8] sm:$0xff]
    %v59 = vld [vmem:[#allocation5] sm:$0xff]
    %v60 = vld [vmem:[#allocation5 + $0x8] sm:$0xff]
    %v61 = vld [vmem:[#allocation5 + $0x10] sm:$0xff]
    %v62 = vld [vmem:[#allocation5 + $0x18] sm:$0xff]
    %v63 = vld [vmem:[#allocation5 + $0x20] sm:$0xff]
    %v64 = vld [vmem:[#allocation5 + $0x28] sm:$0xff]
    %v65 = vld [vmem:[#allocation5 + $0x30] sm:$0xff]
    %v66 = vld [vmem:[#allocation5 + $0x38] sm:$0xff]
    %v67 = vld [vmem:[#allocation5 + $0x40] sm:$0xff]
    %v68 = vld [vmem:[#allocation5 + $0x50] sm:$0xff]
    %v69 = vld [vmem:[#allocation5 + $0x60] ss:$0 sm:$0xff]
    %v70 = vld [vmem:[#allocation5 + $0x70] ss:$0 sm:$0xff]
    %v71 = vmul.f32 %v57, %v57
    %v72 = vmul.f32 %v58, %v58
    %vm73 = vcmask 523264
    %v74 = vsel %vm73, %v71, 0.0
    %75 = vadd.xlane.f32.xlu0 %v74
    %v76 = vpop.xlane.xlu0 %75
    %v77 = vsel %vm73, %v72, 0.0
    %78 = vadd.xlane.f32.xlu0 %v77
    %v79 = vpop.xlane.xlu0 %78
    %v80 = vrcp.pop 64.0
    %v81 = vmul.f32 %v76, %v80
    %v82 = vmul.f32 %v79, %v80
    %v83 = vadd.f32 %v81, 1e-05
    %v84 = vadd.f32 %v82, 1e-05
    %v85 = vrsqrt.pop %v83
    %v86 = vrsqrt.pop %v84
    %v87 = vmul.f32 %v57, %v85
    %v88 = vmul.f32 %v58, %v86
    %v89 = vmul.f32 %v87, %v69
    %v90 = vmul.f32 %v88, %v69
    %v91 = vpack.c.bf16 %v90, %v89
    %v92 = vld [vmem:[#allocation7 + $0x80] sm:$0xff]
    %v93 = vld [vmem:[#allocation7 + $0x90] sm:$0xff]
    %v94 = vld [vmem:[#allocation7 + $0xa0] sm:$0xff]
    %v95 = vld [vmem:[#allocation7 + $0xb0] sm:$0xff]
    %v96 = vld [vmem:[#allocation7 + $0xc0] sm:$0xff]
    %v97 = vld [vmem:[#allocation7 + $0xd0] sm:$0xff]
    %v98 = vld [vmem:[#allocation7 + $0xe0] sm:$0xff]
    %v99 = vld [vmem:[#allocation7 + $0xf0] sm:$0xff]
    %v108 = vunpack.c.l.b16 %v92
    %v109 = vunpack.c.h.b16 %v92
    %v110 = vunpack.c.l.b16 %v93
    %v111 = vunpack.c.h.b16 %v93
    %v112 = vunpack.c.l.b16 %v94
    %v113 = vunpack.c.h.b16 %v94
    %v114 = vunpack.c.l.b16 %v95
    %v115 = vunpack.c.h.b16 %v95
    %v116 = vunpack.c.l.b16 %v96
    %v117 = vunpack.c.h.b16 %v96
    %v118 = vunpack.c.l.b16 %v97
    %v119 = vunpack.c.h.b16 %v97
    %v120 = vunpack.c.l.b16 %v98
    %v121 = vunpack.c.h.b16 %v98
    %v122 = vunpack.c.l.b16 %v99
    %v123 = vunpack.c.h.b16 %v99
    %v124 = vpack.c.b16 %v110, %v108
    %v125 = vpack.c.b16 %v111, %v109
    %v126 = vpack.c.b16 %v114, %v112
    %v127 = vpack.c.b16 %v115, %v113
    %v128 = vpack.c.b16 %v118, %v116
    %v129 = vpack.c.b16 %v119, %v117
    %v130 = vpack.c.b16 %v122, %v120
    %v131 = vpack.c.b16 %v123, %v121
    %v141 = vsel %vm73, %v91, 0
    %143 = vmatprep.subr.bf16.mxu0 0
    %144 = vmatpush1.bf16.msra.mxu0 0
    %145 = vmatprep.subr.bf16.mxu0 0
    %146 = vmatpush1.bf16.msra.mxu0 0
    %147 = vmatprep.subr.bf16.mxu0 0
    %148 = vmatpush1.bf16.msra.mxu0 0
    %149 = vmatprep.subr.bf16.mxu0 0
    %150 = vmatpush1.bf16.msra.mxu0 0
    %151 = vmatprep.subr.bf16.mxu0 %v131
    %152 = vmatpush1.bf16.msra.mxu0 %v130
    %153 = vmatprep.subr.bf16.mxu0 %v129
    %154 = vmatpush1.bf16.msra.mxu0 %v128
    %155 = vmatprep.subr.bf16.mxu0 %v127
    %156 = vmatpush1.bf16.msra.mxu0 %v126
    %157 = vmatprep.subr.bf16.mxu0 %v125
    %158 = vmatpush1.bf16.msra.mxu0 %v124
    %159 = vmatprep.subr.bf16.mxu0 0
    %160 = vmatpush2.bf16.msra.mxu0 0
    %161 = vmatprep.subr.bf16.mxu0 0
    %162 = vmatpush2.bf16.msra.mxu0 0
    %163 = vmatprep.subr.bf16.mxu0 0
    %164 = vmatpush2.bf16.msra.mxu0 0
    %165 = vmatprep.subr.bf16.mxu0 0
    %166 = vmatpush2.bf16.msra.mxu0 0
    %167 = vmatprep.subr.bf16.mxu0 0
    %168 = vmatpush2.bf16.msra.mxu0 0
    %169 = vmatprep.subr.bf16.mxu0 0
    %170 = vmatpush2.bf16.msra.mxu0 0
    %171 = vmatprep.subr.bf16.mxu0 0
    %172 = vmatpush2.bf16.msra.mxu0 0
    %173 = vmatprep.subr.bf16.mxu0 0
    %174 = vmatpush2.bf16.msra.mxu0 0
    %175 = vmatprep.mubr.bf16.mxu0 0
    %176 = vmatmul.mubr.bf16.gmra.mxu0 %v141
    %v177 = vpop.f32.mrf.mxu0
    %v178 = vadd.f32 0.0, %v177
    %v179 = vpop.f32.mrf.mxu0
    %v180 = vadd.f32 0.0, %v179
    %v181 = vpop.f32.mrf.mxu0
    %v182 = vadd.f32 0.0, %v181
    %v183 = vpop.f32.mrf.mxu0
    %v184 = vadd.f32 0.0, %v183
    %185 = vdwg.mxu0
    %v186 = vld [vmem:[#allocation7 + $0x88] sm:$0xff]
    %v187 = vld [vmem:[#allocation7 + $0x98] sm:$0xff]
    %v188 = vld [vmem:[#allocation7 + $0xa8] sm:$0xff]
    %v189 = vld [vmem:[#allocation7 + $0xb8] sm:$0xff]
    %v190 = vld [vmem:[#allocation7 + $0xc8] sm:$0xff]
    %v191 = vld [vmem:[#allocation7 + $0xd8] sm:$0xff]
    %v192 = vld [vmem:[#allocation7 + $0xe8] sm:$0xff]
    %v193 = vld [vmem:[#allocation7 + $0xf8] sm:$0xff]
    %v202 = vunpack.c.l.b16 %v186
    %v203 = vunpack.c.h.b16 %v186
    %v204 = vunpack.c.l.b16 %v187
    %v205 = vunpack.c.h.b16 %v187
    %v206 = vunpack.c.l.b16 %v188
    %v207 = vunpack.c.h.b16 %v188
    %v208 = vunpack.c.l.b16 %v189
    %v209 = vunpack.c.h.b16 %v189
    %v210 = vunpack.c.l.b16 %v190
    %v211 = vunpack.c.h.b16 %v190
    %v212 = vunpack.c.l.b16 %v191
    %v213 = vunpack.c.h.b16 %v191
    %v214 = vunpack.c.l.b16 %v192
    %v215 = vunpack.c.h.b16 %v192
    %v216 = vunpack.c.l.b16 %v193
    %v217 = vunpack.c.h.b16 %v193
    %v218 = vpack.c.b16 %v204, %v202
    %v219 = vpack.c.b16 %v205, %v203
    %v220 = vpack.c.b16 %v208, %v206
    %v221 = vpack.c.b16 %v209, %v207
    %v222 = vpack.c.b16 %v212, %v210
    %v223 = vpack.c.b16 %v213, %v211
    %v224 = vpack.c.b16 %v216, %v214
    %v225 = vpack.c.b16 %v217, %v215
    %234 = vmatprep.subr.bf16.mxu0 0
    %235 = vmatpush1.bf16.msra.mxu0 0
    %236 = vmatprep.subr.bf16.mxu0 0
    %237 = vmatpush1.bf16.msra.mxu0 0
    %238 = vmatprep.subr.bf16.mxu0 0
    %239 = vmatpush1.bf16.msra.mxu0 0
    %240 = vmatprep.subr.bf16.mxu0 0
    %241 = vmatpush1.bf16.msra.mxu0 0
    %242 = vmatprep.subr.bf16.mxu0 %v225
    %243 = vmatpush1.bf16.msra.mxu0 %v224
    %244 = vmatprep.subr.bf16.mxu0 %v223
    %245 = vmatpush1.bf16.msra.mxu0 %v222
    %246 = vmatprep.subr.bf16.mxu0 %v221
    %247 = vmatpush1.bf16.msra.mxu0 %v220
    %248 = vmatprep.subr.bf16.mxu0 %v219
    %249 = vmatpush1.bf16.msra.mxu0 %v218
    %250 = vmatprep.subr.bf16.mxu0 0
    %251 = vmatpush2.bf16.msra.mxu0 0
    %252 = vmatprep.subr.bf16.mxu0 0
    %253 = vmatpush2.bf16.msra.mxu0 0
    %254 = vmatprep.subr.bf16.mxu0 0
    %255 = vmatpush2.bf16.msra.mxu0 0
    %256 = vmatprep.subr.bf16.mxu0 0
    %257 = vmatpush2.bf16.msra.mxu0 0
    %258 = vmatprep.subr.bf16.mxu0 0
    %259 = vmatpush2.bf16.msra.mxu0 0
    %260 = vmatprep.subr.bf16.mxu0 0
    %261 = vmatpush2.bf16.msra.mxu0 0
    %262 = vmatprep.subr.bf16.mxu0 0
    %263 = vmatpush2.bf16.msra.mxu0 0
    %264 = vmatprep.subr.bf16.mxu0 0
    %265 = vmatpush2.bf16.msra.mxu0 0
    %266 = vmatprep.mubr.bf16.mxu0 0
    %267 = vmatmul.mubr.bf16.gmra.mxu0 %v141
    %v268 = vpop.f32.mrf.mxu0
    %v269 = vadd.f32 0.0, %v268
    %v270 = vpop.f32.mrf.mxu0
    %v271 = vadd.f32 0.0, %v270
    %v272 = vpop.f32.mrf.mxu0
    %v273 = vadd.f32 0.0, %v272
    %v274 = vpop.f32.mrf.mxu0
    %v275 = vadd.f32 0.0, %v274
    %276 = vdwg.mxu0
    %v277 = vmul.f32 %v178, %v59
    %v278 = vmul.f32 %v180, %v60
    %v279 = vmul.f32 %v182, %v61
    %v280 = vmul.f32 %v184, %v62
    %v281 = vmul.f32 %v269, %v63
    %v282 = vmul.f32 %v271, %v64
    %v283 = vmul.f32 %v273, %v65
    %v284 = vmul.f32 %v275, %v66
    %v285 = vadd.f32 %v277, %v281
    %v286 = vadd.f32 %v278, %v282
    %v287 = vadd.f32 %v279, %v283
    %v288 = vadd.f32 %v280, %v284
    %v289 = vpack.c.bf16 %v287, %v285
    %v290 = vpack.c.bf16 %v288, %v286
    %292 = vrot.lane.b32.xlu0 %v289, 64
    %v293 = vpop.permute.xlu0 %292
    %vm294 = vcmask 130048
    %v296 = vsel %vm294, %v289, 0
    %v299 = vsel %vm294, %v293, 0
    %301 = vmatprep.subr.bf16.mxu0 0
    %302 = vmatpush1.bf16.xpose.msra.mxu0 0
    %303 = vmatprep.subr.bf16.mxu0 0
    %304 = vmatpush1.bf16.xpose.msra.mxu0 0
    %305 = vmatprep.subr.bf16.mxu0 0
    %306 = vmatpush1.bf16.xpose.msra.mxu0 0
    %307 = vmatprep.subr.bf16.mxu0 0
    %308 = vmatpush1.bf16.xpose.msra.mxu0 0
    %309 = vmatprep.subr.bf16.mxu0 0
    %310 = vmatpush1.bf16.xpose.msra.mxu0 0
    %311 = vmatprep.subr.bf16.mxu0 0
    %312 = vmatpush1.bf16.xpose.msra.mxu0 0
    %313 = vmatprep.subr.bf16.mxu0 0
    %314 = vmatpush1.bf16.xpose.msra.mxu0 0
    %315 = vmatprep.subr.bf16.mxu0 0
    %316 = vmatpush1.bf16.xpose.msra.mxu0 %v299
    %317 = vmatprep.subr.bf16.mxu0 0
    %318 = vmatpush2.bf16.xpose.msra.mxu0 0
    %319 = vmatprep.subr.bf16.mxu0 0
    %320 = vmatpush2.bf16.xpose.msra.mxu0 0
    %321 = vmatprep.subr.bf16.mxu0 0
    %322 = vmatpush2.bf16.xpose.msra.mxu0 0
    %323 = vmatprep.subr.bf16.mxu0 0
    %324 = vmatpush2.bf16.xpose.msra.mxu0 0
    %325 = vmatprep.subr.bf16.mxu0 0
    %326 = vmatpush2.bf16.xpose.msra.mxu0 0
    %327 = vmatprep.subr.bf16.mxu0 0
    %328 = vmatpush2.bf16.xpose.msra.mxu0 0
    %329 = vmatprep.subr.bf16.mxu0 0
    %330 = vmatpush2.bf16.xpose.msra.mxu0 0
    %331 = vmatprep.subr.bf16.mxu0 0
    %332 = vmatpush2.bf16.xpose.msra.mxu0 0
    %333 = vmatprep.mubr.bf16.mxu0 0
    %334 = vmatmul.mubr.bf16.gmra.mxu0 %v296
    %v335 = vpop.f32.mrf.mxu0
    %v336 = vadd.f32 %v67, %v335
    %v337 = vpop.f32.mrf.mxu0
    %v338 = vpop.f32.mrf.mxu0
    %v339 = vadd.f32 %v68, %v338
    %v340 = vpop.f32.mrf.mxu0
    %341 = vdwg.mxu0
    %v342 = vsel %vm294, %v336, -inf
    %343 = vmax.xlane.f32.xlu0 %v342
    %v344 = vpop.xlane.xlu0 %343
    %v345 = vsel %vm294, %v339, -inf
    %346 = vmax.xlane.f32.xlu0 %v345
    %v347 = vpop.xlane.xlu0 %346
    %v348 = vsub.f32 %v336, %v344
    %v349 = vsub.f32 %v339, %v347
    %v350 = vmul.f32 %v348, 1.442695
    %v351 = vpow.pop %v350
    %v352 = vmul.f32 %v349, 1.442695
    %v353 = vpow.pop %v352
    %v354 = vsel %vm294, %v351, 0.0
    %355 = vadd.xlane.f32.xlu0 %v354
    %v356 = vpop.xlane.xlu0 %355
    %v357 = vsel %vm294, %v353, 0.0
    %358 = vadd.xlane.f32.xlu0 %v357
    %v359 = vpop.xlane.xlu0 %358
    %v360 = vrcp.pop %v356
    %v361 = vmul.f32 %v351, %v360
    %v362 = vrcp.pop %v359
    %v363 = vmul.f32 %v353, %v362
    %v364 = vpack.c.bf16 %v363, %v361
    %v366 = vsel %vm294, %v364, 0
    %368 = vmatprep.subr.bf16.mxu0 0
    %369 = vmatpush1.bf16.msra.mxu0 0
    %370 = vmatprep.subr.bf16.mxu0 0
    %371 = vmatpush1.bf16.msra.mxu0 0
    %372 = vmatprep.subr.bf16.mxu0 0
    %373 = vmatpush1.bf16.msra.mxu0 0
    %374 = vmatprep.subr.bf16.mxu0 0
    %375 = vmatpush1.bf16.msra.mxu0 0
    %376 = vmatprep.subr.bf16.mxu0 0
    %377 = vmatpush1.bf16.msra.mxu0 0
    %378 = vmatprep.subr.bf16.mxu0 0
    %379 = vmatpush1.bf16.msra.mxu0 0
    %380 = vmatprep.subr.bf16.mxu0 0
    %381 = vmatpush1.bf16.msra.mxu0 0
    %382 = vmatprep.subr.bf16.mxu0 0
    %383 = vmatpush1.bf16.msra.mxu0 %v290
    %384 = vmatprep.subr.bf16.mxu0 0
    %385 = vmatpush2.bf16.msra.mxu0 0
    %386 = vmatprep.subr.bf16.mxu0 0
    %387 = vmatpush2.bf16.msra.mxu0 0
    %388 = vmatprep.subr.bf16.mxu0 0
    %389 = vmatpush2.bf16.msra.mxu0 0
    %390 = vmatprep.subr.bf16.mxu0 0
    %391 = vmatpush2.bf16.msra.mxu0 0
    %392 = vmatprep.subr.bf16.mxu0 0
    %393 = vmatpush2.bf16.msra.mxu0 0
    %394 = vmatprep.subr.bf16.mxu0 0
    %395 = vmatpush2.bf16.msra.mxu0 0
    %396 = vmatprep.subr.bf16.mxu0 0
    %397 = vmatpush2.bf16.msra.mxu0 0
    %398 = vmatprep.subr.bf16.mxu0 0
    %399 = vmatpush2.bf16.msra.mxu0 0
    %400 = vmatprep.mubr.bf16.mxu0 0
    %401 = vmatmul.mubr.bf16.gmra.mxu0 %v366
    %v402 = vpop.f32.mrf.mxu0
    %v403 = vadd.f32 0.0, %v402
    %v404 = vpop.f32.mrf.mxu0
    %v405 = vpop.f32.mrf.mxu0
    %v406 = vadd.f32 0.0, %v405
    %v407 = vpop.f32.mrf.mxu0
    %408 = vdwg.mxu0
    %v409 = vld [vmem:[#allocation7 + $0x100] sm:$0xf]
    %v410 = vld [vmem:[#allocation7 + $0x110] sm:$0xf]
    %v411 = vpack.c.bf16 %v406, %v403
    %v414 = vunpack.c.l.b16 %v409
    %v415 = vunpack.c.l.b16 %v410
    %v416 = vpack.c.b16 %v415, %v414
    %417 = vrot.lane.b32.xlu0 %v416, 64
    %v418 = vpop.permute.xlu0 %417
    %v421 = vsel %vm294, %v411, 0
    %423 = vmatprep.subr.bf16.mxu0 0
    %424 = vmatpush1.bf16.msra.mxu0 0
    %425 = vmatprep.subr.bf16.mxu0 0
    %426 = vmatpush1.bf16.msra.mxu0 0
    %427 = vmatprep.subr.bf16.mxu0 0
    %428 = vmatpush1.bf16.msra.mxu0 0
    %429 = vmatprep.subr.bf16.mxu0 0
    %430 = vmatpush1.bf16.msra.mxu0 0
    %431 = vmatprep.subr.bf16.mxu0 0
    %432 = vmatpush1.bf16.msra.mxu0 0
    %433 = vmatprep.subr.bf16.mxu0 0
    %434 = vmatpush1.bf16.msra.mxu0 0
    %435 = vmatprep.subr.bf16.mxu0 0
    %436 = vmatpush1.bf16.msra.mxu0 0
    %437 = vmatprep.subr.bf16.mxu0 0
    %438 = vmatpush1.bf16.msra.mxu0 %v418
    %439 = vmatprep.subr.bf16.mxu0 0
    %440 = vmatpush2.bf16.msra.mxu0 0
    %441 = vmatprep.subr.bf16.mxu0 0
    %442 = vmatpush2.bf16.msra.mxu0 0
    %443 = vmatprep.subr.bf16.mxu0 0
    %444 = vmatpush2.bf16.msra.mxu0 0
    %445 = vmatprep.subr.bf16.mxu0 0
    %446 = vmatpush2.bf16.msra.mxu0 0
    %447 = vmatprep.subr.bf16.mxu0 0
    %448 = vmatpush2.bf16.msra.mxu0 0
    %449 = vmatprep.subr.bf16.mxu0 0
    %450 = vmatpush2.bf16.msra.mxu0 0
    %451 = vmatprep.subr.bf16.mxu0 0
    %452 = vmatpush2.bf16.msra.mxu0 0
    %453 = vmatprep.subr.bf16.mxu0 0
    %454 = vmatpush2.bf16.msra.mxu0 0
    %455 = vmatprep.mubr.bf16.mxu0 0
    %456 = vmatmul.mubr.bf16.gmra.mxu0 %v421
    %v457 = vpop.f32.mrf.mxu0
    %v458 = vadd.f32 0.0, %v457
    %v459 = vpop.f32.mrf.mxu0
    %v460 = vpop.f32.mrf.mxu0
    %v461 = vadd.f32 0.0, %v460
    %v462 = vpop.f32.mrf.mxu0
    %463 = vdwg.mxu0
    %v464 = vadd.f32 %v57, %v458
    %v465 = vadd.f32 %v58, %v461
    %466 = vrot.lane.b32.xlu0 %v289, 112
    %v467 = vpop.permute.xlu0 %466
    %468 = vrot.lane.b32.xlu0 %v289, 48
    %v469 = vpop.permute.xlu0 %468
    %v471 = vsel %vm294, %v467, 0
    %v474 = vsel %vm294, %v469, 0
    %476 = vmatprep.subr.bf16.mxu0 0
    %477 = vmatpush1.bf16.xpose.msra.mxu0 0
    %478 = vmatprep.subr.bf16.mxu0 0
    %479 = vmatpush1.bf16.xpose.msra.mxu0 0
    %480 = vmatprep.subr.bf16.mxu0 0
    %481 = vmatpush1.bf16.xpose.msra.mxu0 0
    %482 = vmatprep.subr.bf16.mxu0 0
    %483 = vmatpush1.bf16.xpose.msra.mxu0 0
    %484 = vmatprep.subr.bf16.mxu0 0
    %485 = vmatpush1.bf16.xpose.msra.mxu0 0
    %486 = vmatprep.subr.bf16.mxu0 0
    %487 = vmatpush1.bf16.xpose.msra.mxu0 0
    %488 = vmatprep.subr.bf16.mxu0 0
    %489 = vmatpush1.bf16.xpose.msra.mxu0 0
    %490 = vmatprep.subr.bf16.mxu0 0
    %491 = vmatpush1.bf16.xpose.msra.mxu0 %v474
    %492 = vmatprep.subr.bf16.mxu0 0
    %493 = vmatpush2.bf16.xpose.msra.mxu0 0
    %494 = vmatprep.subr.bf16.mxu0 0
    %495 = vmatpush2.bf16.xpose.msra.mxu0 0
    %496 = vmatprep.subr.bf16.mxu0 0
    %497 = vmatpush2.bf16.xpose.msra.mxu0 0
    %498 = vmatprep.subr.bf16.mxu0 0
    %499 = vmatpush2.bf16.xpose.msra.mxu0 0
    %500 = vmatprep.subr.bf16.mxu0 0
    %501 = vmatpush2.bf16.xpose.msra.mxu0 0
    %502 = vmatprep.subr.bf16.mxu0 0
    %503 = vmatpush2.bf16.xpose.msra.mxu0 0
    %504 = vmatprep.subr.bf16.mxu0 0
    %505 = vmatpush2.bf16.xpose.msra.mxu0 0
    %506 = vmatprep.subr.bf16.mxu0 0
    %507 = vmatpush2.bf16.xpose.msra.mxu0 0
    %508 = vmatprep.mubr.bf16.mxu0 0
    %509 = vmatmul.mubr.bf16.gmra.mxu0 %v471
    %v510 = vpop.f32.mrf.mxu0
    %v511 = vadd.f32 %v67, %v510
    %v512 = vpop.f32.mrf.mxu0
    %v513 = vpop.f32.mrf.mxu0
    %v514 = vadd.f32 %v68, %v513
    %v515 = vpop.f32.mrf.mxu0
    %516 = vdwg.mxu0
    %v517 = vsel %vm294, %v511, -inf
    %518 = vmax.xlane.f32.xlu0 %v517
    %v519 = vpop.xlane.xlu0 %518
    %v520 = vsel %vm294, %v514, -inf
    %521 = vmax.xlane.f32.xlu0 %v520
    %v522 = vpop.xlane.xlu0 %521
    %v523 = vsub.f32 %v511, %v519
    %v524 = vsub.f32 %v514, %v522
    %v525 = vmul.f32 %v523, 1.442695
    %v526 = vpow.pop %v525
    %v527 = vmul.f32 %v524, 1.442695
    %v528 = vpow.pop %v527
    %v529 = vsel %vm294, %v526, 0.0
    %530 = vadd.xlane.f32.xlu0 %v529
    %v531 = vpop.xlane.xlu0 %530
    %v532 = vsel %vm294, %v528, 0.0
    %533 = vadd.xlane.f32.xlu0 %v532
    %v534 = vpop.xlane.xlu0 %533
    %v535 = vrcp.pop %v531
    %v536 = vmul.f32 %v526, %v535
    %v537 = vrcp.pop %v534
    %v538 = vmul.f32 %v528, %v537
    %v539 = vpack.c.bf16 %v538, %v536
    %541 = vrot.lane.b32.xlu0 %v290, 112
    %v542 = vpop.permute.xlu0 %541
    %v545 = vsel %vm294, %v539, 0
    %547 = vmatprep.subr.bf16.mxu0 0
    %548 = vmatpush1.bf16.msra.mxu0 0
    %549 = vmatprep.subr.bf16.mxu0 0
    %550 = vmatpush1.bf16.msra.mxu0 0
    %551 = vmatprep.subr.bf16.mxu0 0
    %552 = vmatpush1.bf16.msra.mxu0 0
    %553 = vmatprep.subr.bf16.mxu0 0
    %554 = vmatpush1.bf16.msra.mxu0 0
    %555 = vmatprep.subr.bf16.mxu0 0
    %556 = vmatpush1.bf16.msra.mxu0 0
    %557 = vmatprep.subr.bf16.mxu0 0
    %558 = vmatpush1.bf16.msra.mxu0 0
    %559 = vmatprep.subr.bf16.mxu0 0
    %560 = vmatpush1.bf16.msra.mxu0 0
    %561 = vmatprep.subr.bf16.mxu0 0
    %562 = vmatpush1.bf16.msra.mxu0 %v542
    %563 = vmatprep.subr.bf16.mxu0 0
    %564 = vmatpush2.bf16.msra.mxu0 0
    %565 = vmatprep.subr.bf16.mxu0 0
    %566 = vmatpush2.bf16.msra.mxu0 0
    %567 = vmatprep.subr.bf16.mxu0 0
    %568 = vmatpush2.bf16.msra.mxu0 0
    %569 = vmatprep.subr.bf16.mxu0 0
    %570 = vmatpush2.bf16.msra.mxu0 0
    %571 = vmatprep.subr.bf16.mxu0 0
    %572 = vmatpush2.bf16.msra.mxu0 0
    %573 = vmatprep.subr.bf16.mxu0 0
    %574 = vmatpush2.bf16.msra.mxu0 0
    %575 = vmatprep.subr.bf16.mxu0 0
    %576 = vmatpush2.bf16.msra.mxu0 0
    %577 = vmatprep.subr.bf16.mxu0 0
    %578 = vmatpush2.bf16.msra.mxu0 0
    %579 = vmatprep.mubr.bf16.mxu0 0
    %580 = vmatmul.mubr.bf16.gmra.mxu0 %v545
    %v581 = vpop.f32.mrf.mxu0
    %v582 = vadd.f32 0.0, %v581
    %v583 = vpop.f32.mrf.mxu0
    %v584 = vpop.f32.mrf.mxu0
    %v585 = vadd.f32 0.0, %v584
    %v586 = vpop.f32.mrf.mxu0
    %587 = vdwg.mxu0
    %v588 = vld [vmem:[#allocation7 + $0x120] sm:$0xf]
    %v589 = vld [vmem:[#allocation7 + $0x130] sm:$0xf]
    %v590 = vpack.c.bf16 %v585, %v582
    %v593 = vunpack.c.l.b16 %v588
    %v594 = vunpack.c.l.b16 %v589
    %v595 = vpack.c.b16 %v594, %v593
    %596 = vrot.lane.b32.xlu0 %v595, 64
    %v597 = vpop.permute.xlu0 %596
    %v600 = vsel %vm294, %v590, 0
    %602 = vmatprep.subr.bf16.mxu0 0
    %603 = vmatpush1.bf16.msra.mxu0 0
    %604 = vmatprep.subr.bf16.mxu0 0
    %605 = vmatpush1.bf16.msra.mxu0 0
    %606 = vmatprep.subr.bf16.mxu0 0
    %607 = vmatpush1.bf16.msra.mxu0 0
    %608 = vmatprep.subr.bf16.mxu0 0
    %609 = vmatpush1.bf16.msra.mxu0 0
    %610 = vmatprep.subr.bf16.mxu0 0
    %611 = vmatpush1.bf16.msra.mxu0 0
    %612 = vmatprep.subr.bf16.mxu0 0
    %613 = vmatpush1.bf16.msra.mxu0 0
    %614 = vmatprep.subr.bf16.mxu0 0
    %615 = vmatpush1.bf16.msra.mxu0 0
    %616 = vmatprep.subr.bf16.mxu0 0
    %617 = vmatpush1.bf16.msra.mxu0 %v597
    %618 = vmatprep.subr.bf16.mxu0 0
    %619 = vmatpush2.bf16.msra.mxu0 0
    %620 = vmatprep.subr.bf16.mxu0 0
    %621 = vmatpush2.bf16.msra.mxu0 0
    %622 = vmatprep.subr.bf16.mxu0 0
    %623 = vmatpush2.bf16.msra.mxu0 0
    %624 = vmatprep.subr.bf16.mxu0 0
    %625 = vmatpush2.bf16.msra.mxu0 0
    %626 = vmatprep.subr.bf16.mxu0 0
    %627 = vmatpush2.bf16.msra.mxu0 0
    %628 = vmatprep.subr.bf16.mxu0 0
    %629 = vmatpush2.bf16.msra.mxu0 0
    %630 = vmatprep.subr.bf16.mxu0 0
    %631 = vmatpush2.bf16.msra.mxu0 0
    %632 = vmatprep.subr.bf16.mxu0 0
    %633 = vmatpush2.bf16.msra.mxu0 0
    %634 = vmatprep.mubr.bf16.mxu0 0
    %635 = vmatmul.mubr.bf16.gmra.mxu0 %v600
    %v636 = vpop.f32.mrf.mxu0
    %v637 = vadd.f32 0.0, %v636
    %v638 = vpop.f32.mrf.mxu0
    %v639 = vpop.f32.mrf.mxu0
    %v640 = vadd.f32 0.0, %v639
    %v641 = vpop.f32.mrf.mxu0
    %642 = vdwg.mxu0
    %v643 = vadd.f32 %v464, %v637
    %v644 = vadd.f32 %v465, %v640
    %645 = vrot.lane.b32.xlu0 %v289, 96
    %v646 = vpop.permute.xlu0 %645
    %647 = vrot.lane.b32.xlu0 %v289, 32
    %v648 = vpop.permute.xlu0 %647
    %v650 = vsel %vm294, %v646, 0
    %v653 = vsel %vm294, %v648, 0
    %655 = vmatprep.subr.bf16.mxu0 0
    %656 = vmatpush1.bf16.xpose.msra.mxu0 0
    %657 = vmatprep.subr.bf16.mxu0 0
    %658 = vmatpush1.bf16.xpose.msra.mxu0 0
    %659 = vmatprep.subr.bf16.mxu0 0
    %660 = vmatpush1.bf16.xpose.msra.mxu0 0
    %661 = vmatprep.subr.bf16.mxu0 0
    %662 = vmatpush1.bf16.xpose.msra.mxu0 0
    %663 = vmatprep.subr.bf16.mxu0 0
    %664 = vmatpush1.bf16.xpose.msra.mxu0 0
    %665 = vmatprep.subr.bf16.mxu0 0
    %666 = vmatpush1.bf16.xpose.msra.mxu0 0
    %667 = vmatprep.subr.bf16.mxu0 0
    %668 = vmatpush1.bf16.xpose.msra.mxu0 0
    %669 = vmatprep.subr.bf16.mxu0 0
    %670 = vmatpush1.bf16.xpose.msra.mxu0 %v653
    %671 = vmatprep.subr.bf16.mxu0 0
    %672 = vmatpush2.bf16.xpose.msra.mxu0 0
    %673 = vmatprep.subr.bf16.mxu0 0
    %674 = vmatpush2.bf16.xpose.msra.mxu0 0
    %675 = vmatprep.subr.bf16.mxu0 0
    %676 = vmatpush2.bf16.xpose.msra.mxu0 0
    %677 = vmatprep.subr.bf16.mxu0 0
    %678 = vmatpush2.bf16.xpose.msra.mxu0 0
    %679 = vmatprep.subr.bf16.mxu0 0
    %680 = vmatpush2.bf16.xpose.msra.mxu0 0
    %681 = vmatprep.subr.bf16.mxu0 0
    %682 = vmatpush2.bf16.xpose.msra.mxu0 0
    %683 = vmatprep.subr.bf16.mxu0 0
    %684 = vmatpush2.bf16.xpose.msra.mxu0 0
    %685 = vmatprep.subr.bf16.mxu0 0
    %686 = vmatpush2.bf16.xpose.msra.mxu0 0
    %687 = vmatprep.mubr.bf16.mxu0 0
    %688 = vmatmul.mubr.bf16.gmra.mxu0 %v650
    %v689 = vpop.f32.mrf.mxu0
    %v690 = vadd.f32 %v67, %v689
    %v691 = vpop.f32.mrf.mxu0
    %v692 = vpop.f32.mrf.mxu0
    %v693 = vadd.f32 %v68, %v692
    %v694 = vpop.f32.mrf.mxu0
    %695 = vdwg.mxu0
    %v696 = vsel %vm294, %v690, -inf
    %697 = vmax.xlane.f32.xlu0 %v696
    %v698 = vpop.xlane.xlu0 %697
    %v699 = vsel %vm294, %v693, -inf
    %700 = vmax.xlane.f32.xlu0 %v699
    %v701 = vpop.xlane.xlu0 %700
    %v702 = vsub.f32 %v690, %v698
    %v703 = vsub.f32 %v693, %v701
    %v704 = vmul.f32 %v702, 1.442695
    %v705 = vpow.pop %v704
    %v706 = vmul.f32 %v703, 1.442695
    %v707 = vpow.pop %v706
    %v708 = vsel %vm294, %v705, 0.0
    %709 = vadd.xlane.f32.xlu0 %v708
    %v710 = vpop.xlane.xlu0 %709
    %v711 = vsel %vm294, %v707, 0.0
    %712 = vadd.xlane.f32.xlu0 %v711
    %v713 = vpop.xlane.xlu0 %712
    %v714 = vrcp.pop %v710
    %v715 = vmul.f32 %v705, %v714
    %v716 = vrcp.pop %v713
    %v717 = vmul.f32 %v707, %v716
    %v718 = vpack.c.bf16 %v717, %v715
    %719 = vrot.lane.b32.xlu0 %v290, 96
    %v720 = vpop.permute.xlu0 %719
    %v723 = vsel %vm294, %v718, 0
    %725 = vmatprep.subr.bf16.mxu0 0
    %726 = vmatpush1.bf16.msra.mxu0 0
    %727 = vmatprep.subr.bf16.mxu0 0
    %728 = vmatpush1.bf16.msra.mxu0 0
    %729 = vmatprep.subr.bf16.mxu0 0
    %730 = vmatpush1.bf16.msra.mxu0 0
    %731 = vmatprep.subr.bf16.mxu0 0
    %732 = vmatpush1.bf16.msra.mxu0 0
    %733 = vmatprep.subr.bf16.mxu0 0
    %734 = vmatpush1.bf16.msra.mxu0 0
    %735 = vmatprep.subr.bf16.mxu0 0
    %736 = vmatpush1.bf16.msra.mxu0 0
    %737 = vmatprep.subr.bf16.mxu0 0
    %738 = vmatpush1.bf16.msra.mxu0 0
    %739 = vmatprep.subr.bf16.mxu0 0
    %740 = vmatpush1.bf16.msra.mxu0 %v720
    %741 = vmatprep.subr.bf16.mxu0 0
    %742 = vmatpush2.bf16.msra.mxu0 0
    %743 = vmatprep.subr.bf16.mxu0 0
    %744 = vmatpush2.bf16.msra.mxu0 0
    %745 = vmatprep.subr.bf16.mxu0 0
    %746 = vmatpush2.bf16.msra.mxu0 0
    %747 = vmatprep.subr.bf16.mxu0 0
    %748 = vmatpush2.bf16.msra.mxu0 0
    %749 = vmatprep.subr.bf16.mxu0 0
    %750 = vmatpush2.bf16.msra.mxu0 0
    %751 = vmatprep.subr.bf16.mxu0 0
    %752 = vmatpush2.bf16.msra.mxu0 0
    %753 = vmatprep.subr.bf16.mxu0 0
    %754 = vmatpush2.bf16.msra.mxu0 0
    %755 = vmatprep.subr.bf16.mxu0 0
    %756 = vmatpush2.bf16.msra.mxu0 0
    %757 = vmatprep.mubr.bf16.mxu0 0
    %758 = vmatmul.mubr.bf16.gmra.mxu0 %v723
    %v759 = vpop.f32.mrf.mxu0
    %v760 = vadd.f32 0.0, %v759
    %v761 = vpop.f32.mrf.mxu0
    %v762 = vpop.f32.mrf.mxu0
    %v763 = vadd.f32 0.0, %v762
    %v764 = vpop.f32.mrf.mxu0
    %765 = vdwg.mxu0
    %v766 = vld [vmem:[#allocation7 + $0x140] sm:$0xf]
    %v767 = vld [vmem:[#allocation7 + $0x150] sm:$0xf]
    %v768 = vpack.c.bf16 %v763, %v760
    %v771 = vunpack.c.l.b16 %v766
    %v772 = vunpack.c.l.b16 %v767
    %v773 = vpack.c.b16 %v772, %v771
    %774 = vrot.lane.b32.xlu0 %v773, 64
    %v775 = vpop.permute.xlu0 %774
    %v778 = vsel %vm294, %v768, 0
    %780 = vmatprep.subr.bf16.mxu0 0
    %781 = vmatpush1.bf16.msra.mxu0 0
    %782 = vmatprep.subr.bf16.mxu0 0
    %783 = vmatpush1.bf16.msra.mxu0 0
    %784 = vmatprep.subr.bf16.mxu0 0
    %785 = vmatpush1.bf16.msra.mxu0 0
    %786 = vmatprep.subr.bf16.mxu0 0
    %787 = vmatpush1.bf16.msra.mxu0 0
    %788 = vmatprep.subr.bf16.mxu0 0
    %789 = vmatpush1.bf16.msra.mxu0 0
    %790 = vmatprep.subr.bf16.mxu0 0
    %791 = vmatpush1.bf16.msra.mxu0 0
    %792 = vmatprep.subr.bf16.mxu0 0
    %793 = vmatpush1.bf16.msra.mxu0 0
    %794 = vmatprep.subr.bf16.mxu0 0
    %795 = vmatpush1.bf16.msra.mxu0 %v775
    %796 = vmatprep.subr.bf16.mxu0 0
    %797 = vmatpush2.bf16.msra.mxu0 0
    %798 = vmatprep.subr.bf16.mxu0 0
    %799 = vmatpush2.bf16.msra.mxu0 0
    %800 = vmatprep.subr.bf16.mxu0 0
    %801 = vmatpush2.bf16.msra.mxu0 0
    %802 = vmatprep.subr.bf16.mxu0 0
    %803 = vmatpush2.bf16.msra.mxu0 0
    %804 = vmatprep.subr.bf16.mxu0 0
    %805 = vmatpush2.bf16.msra.mxu0 0
    %806 = vmatprep.subr.bf16.mxu0 0
    %807 = vmatpush2.bf16.msra.mxu0 0
    %808 = vmatprep.subr.bf16.mxu0 0
    %809 = vmatpush2.bf16.msra.mxu0 0
    %810 = vmatprep.subr.bf16.mxu0 0
    %811 = vmatpush2.bf16.msra.mxu0 0
    %812 = vmatprep.mubr.bf16.mxu0 0
    %813 = vmatmul.mubr.bf16.gmra.mxu0 %v778
    %v814 = vpop.f32.mrf.mxu0
    %v815 = vadd.f32 0.0, %v814
    %v816 = vpop.f32.mrf.mxu0
    %v817 = vpop.f32.mrf.mxu0
    %v818 = vadd.f32 0.0, %v817
    %v819 = vpop.f32.mrf.mxu0
    %820 = vdwg.mxu0
    %v821 = vadd.f32 %v643, %v815
    %v822 = vadd.f32 %v644, %v818
    %823 = vrot.lane.b32.xlu0 %v289, 80
    %v824 = vpop.permute.xlu0 %823
    %825 = vrot.lane.b32.xlu0 %v289, 16
    %v826 = vpop.permute.xlu0 %825
    %v828 = vsel %vm294, %v824, 0
    %v831 = vsel %vm294, %v826, 0
    %833 = vmatprep.subr.bf16.mxu0 0
    %834 = vmatpush1.bf16.xpose.msra.mxu0 0
    %835 = vmatprep.subr.bf16.mxu0 0
    %836 = vmatpush1.bf16.xpose.msra.mxu0 0
    %837 = vmatprep.subr.bf16.mxu0 0
    %838 = vmatpush1.bf16.xpose.msra.mxu0 0
    %839 = vmatprep.subr.bf16.mxu0 0
    %840 = vmatpush1.bf16.xpose.msra.mxu0 0
    %841 = vmatprep.subr.bf16.mxu0 0
    %842 = vmatpush1.bf16.xpose.msra.mxu0 0
    %843 = vmatprep.subr.bf16.mxu0 0
    %844 = vmatpush1.bf16.xpose.msra.mxu0 0
    %845 = vmatprep.subr.bf16.mxu0 0
    %846 = vmatpush1.bf16.xpose.msra.mxu0 0
    %847 = vmatprep.subr.bf16.mxu0 0
    %848 = vmatpush1.bf16.xpose.msra.mxu0 %v831
    %849 = vmatprep.subr.bf16.mxu0 0
    %850 = vmatpush2.bf16.xpose.msra.mxu0 0
    %851 = vmatprep.subr.bf16.mxu0 0
    %852 = vmatpush2.bf16.xpose.msra.mxu0 0
    %853 = vmatprep.subr.bf16.mxu0 0
    %854 = vmatpush2.bf16.xpose.msra.mxu0 0
    %855 = vmatprep.subr.bf16.mxu0 0
    %856 = vmatpush2.bf16.xpose.msra.mxu0 0
    %857 = vmatprep.subr.bf16.mxu0 0
    %858 = vmatpush2.bf16.xpose.msra.mxu0 0
    %859 = vmatprep.subr.bf16.mxu0 0
    %860 = vmatpush2.bf16.xpose.msra.mxu0 0
    %861 = vmatprep.subr.bf16.mxu0 0
    %862 = vmatpush2.bf16.xpose.msra.mxu0 0
    %863 = vmatprep.subr.bf16.mxu0 0
    %864 = vmatpush2.bf16.xpose.msra.mxu0 0
    %865 = vmatprep.mubr.bf16.mxu0 0
    %866 = vmatmul.mubr.bf16.gmra.mxu0 %v828
    %v867 = vpop.f32.mrf.mxu0
    %v868 = vadd.f32 %v67, %v867
    %v869 = vpop.f32.mrf.mxu0
    %v870 = vpop.f32.mrf.mxu0
    %v871 = vadd.f32 %v68, %v870
    %v872 = vpop.f32.mrf.mxu0
    %873 = vdwg.mxu0
    %v874 = vsel %vm294, %v868, -inf
    %875 = vmax.xlane.f32.xlu0 %v874
    %v876 = vpop.xlane.xlu0 %875
    %v877 = vsel %vm294, %v871, -inf
    %878 = vmax.xlane.f32.xlu0 %v877
    %v879 = vpop.xlane.xlu0 %878
    %v880 = vsub.f32 %v868, %v876
    %v881 = vsub.f32 %v871, %v879
    %v882 = vmul.f32 %v880, 1.442695
    %v883 = vpow.pop %v882
    %v884 = vmul.f32 %v881, 1.442695
    %v885 = vpow.pop %v884
    %v886 = vsel %vm294, %v883, 0.0
    %887 = vadd.xlane.f32.xlu0 %v886
    %v888 = vpop.xlane.xlu0 %887
    %v889 = vsel %vm294, %v885, 0.0
    %890 = vadd.xlane.f32.xlu0 %v889
    %v891 = vpop.xlane.xlu0 %890
    %v892 = vrcp.pop %v888
    %v893 = vmul.f32 %v883, %v892
    %v894 = vrcp.pop %v891
    %v895 = vmul.f32 %v885, %v894
    %v896 = vpack.c.bf16 %v895, %v893
    %897 = vrot.lane.b32.xlu0 %v290, 80
    %v898 = vpop.permute.xlu0 %897
    %v901 = vsel %vm294, %v896, 0
    %903 = vmatprep.subr.bf16.mxu0 0
    %904 = vmatpush1.bf16.msra.mxu0 0
    %905 = vmatprep.subr.bf16.mxu0 0
    %906 = vmatpush1.bf16.msra.mxu0 0
    %907 = vmatprep.subr.bf16.mxu0 0
    %908 = vmatpush1.bf16.msra.mxu0 0
    %909 = vmatprep.subr.bf16.mxu0 0
    %910 = vmatpush1.bf16.msra.mxu0 0
    %911 = vmatprep.subr.bf16.mxu0 0
    %912 = vmatpush1.bf16.msra.mxu0 0
    %913 = vmatprep.subr.bf16.mxu0 0
    %914 = vmatpush1.bf16.msra.mxu0 0
    %915 = vmatprep.subr.bf16.mxu0 0
    %916 = vmatpush1.bf16.msra.mxu0 0
    %917 = vmatprep.subr.bf16.mxu0 0
    %918 = vmatpush1.bf16.msra.mxu0 %v898
    %919 = vmatprep.subr.bf16.mxu0 0
    %920 = vmatpush2.bf16.msra.mxu0 0
    %921 = vmatprep.subr.bf16.mxu0 0
    %922 = vmatpush2.bf16.msra.mxu0 0
    %923 = vmatprep.subr.bf16.mxu0 0
    %924 = vmatpush2.bf16.msra.mxu0 0
    %925 = vmatprep.subr.bf16.mxu0 0
    %926 = vmatpush2.bf16.msra.mxu0 0
    %927 = vmatprep.subr.bf16.mxu0 0
    %928 = vmatpush2.bf16.msra.mxu0 0
    %929 = vmatprep.subr.bf16.mxu0 0
    %930 = vmatpush2.bf16.msra.mxu0 0
    %931 = vmatprep.subr.bf16.mxu0 0
    %932 = vmatpush2.bf16.msra.mxu0 0
    %933 = vmatprep.subr.bf16.mxu0 0
    %934 = vmatpush2.bf16.msra.mxu0 0
    %935 = vmatprep.mubr.bf16.mxu0 0
    %936 = vmatmul.mubr.bf16.gmra.mxu0 %v901
    %v937 = vpop.f32.mrf.mxu0
    %v938 = vadd.f32 0.0, %v937
    %v939 = vpop.f32.mrf.mxu0
    %v940 = vpop.f32.mrf.mxu0
    %v941 = vadd.f32 0.0, %v940
    %v942 = vpop.f32.mrf.mxu0
    %943 = vdwg.mxu0
    %v944 = vld [vmem:[#allocation7 + $0x160] sm:$0xf]
    %v945 = vld [vmem:[#allocation7 + $0x170] sm:$0xf]
    %v946 = vpack.c.bf16 %v941, %v938
    %v949 = vunpack.c.l.b16 %v944
    %v950 = vunpack.c.l.b16 %v945
    %v951 = vpack.c.b16 %v950, %v949
    %952 = vrot.lane.b32.xlu0 %v951, 64
    %v953 = vpop.permute.xlu0 %952
    %v956 = vsel %vm294, %v946, 0
    %958 = vmatprep.subr.bf16.mxu0 0
    %959 = vmatpush1.bf16.msra.mxu0 0
    %960 = vmatprep.subr.bf16.mxu0 0
    %961 = vmatpush1.bf16.msra.mxu0 0
    %962 = vmatprep.subr.bf16.mxu0 0
    %963 = vmatpush1.bf16.msra.mxu0 0
    %964 = vmatprep.subr.bf16.mxu0 0
    %965 = vmatpush1.bf16.msra.mxu0 0
    %966 = vmatprep.subr.bf16.mxu0 0
    %967 = vmatpush1.bf16.msra.mxu0 0
    %968 = vmatprep.subr.bf16.mxu0 0
    %969 = vmatpush1.bf16.msra.mxu0 0
    %970 = vmatprep.subr.bf16.mxu0 0
    %971 = vmatpush1.bf16.msra.mxu0 0
    %972 = vmatprep.subr.bf16.mxu0 0
    %973 = vmatpush1.bf16.msra.mxu0 %v953
    %974 = vmatprep.subr.bf16.mxu0 0
    %975 = vmatpush2.bf16.msra.mxu0 0
    %976 = vmatprep.subr.bf16.mxu0 0
    %977 = vmatpush2.bf16.msra.mxu0 0
    %978 = vmatprep.subr.bf16.mxu0 0
    %979 = vmatpush2.bf16.msra.mxu0 0
    %980 = vmatprep.subr.bf16.mxu0 0
    %981 = vmatpush2.bf16.msra.mxu0 0
    %982 = vmatprep.subr.bf16.mxu0 0
    %983 = vmatpush2.bf16.msra.mxu0 0
    %984 = vmatprep.subr.bf16.mxu0 0
    %985 = vmatpush2.bf16.msra.mxu0 0
    %986 = vmatprep.subr.bf16.mxu0 0
    %987 = vmatpush2.bf16.msra.mxu0 0
    %988 = vmatprep.subr.bf16.mxu0 0
    %989 = vmatpush2.bf16.msra.mxu0 0
    %990 = vmatprep.mubr.bf16.mxu0 0
    %991 = vmatmul.mubr.bf16.gmra.mxu0 %v956
    %v992 = vpop.f32.mrf.mxu0
    %v993 = vadd.f32 0.0, %v992
    %v994 = vpop.f32.mrf.mxu0
    %v995 = vpop.f32.mrf.mxu0
    %v996 = vadd.f32 0.0, %v995
    %v997 = vpop.f32.mrf.mxu0
    %998 = vdwg.mxu0
    %v999 = vadd.f32 %v821, %v993
    %v1000 = vadd.f32 %v822, %v996
    %v1001 = vmul.f32 %v999, %v999
    %v1002 = vmul.f32 %v1000, %v1000
    %v1003 = vsel %vm73, %v1001, 0.0
    %1004 = vadd.xlane.f32.xlu0 %v1003
    %v1005 = vpop.xlane.xlu0 %1004
    %v1006 = vsel %vm73, %v1002, 0.0
    %1007 = vadd.xlane.f32.xlu0 %v1006
    %v1008 = vpop.xlane.xlu0 %1007
    %v1009 = vmul.f32 %v1005, %v80
    %v1010 = vmul.f32 %v1008, %v80
    %v1011 = vadd.f32 %v1009, 1e-05
    %v1012 = vadd.f32 %v1010, 1e-05
    %v1013 = vrsqrt.pop %v1011
    %v1014 = vrsqrt.pop %v1012
    %v1015 = vmul.f32 %v999, %v1013
    %v1016 = vmul.f32 %v1000, %v1014
    %v1017 = vmul.f32 %v1015, %v70
    %v1018 = vmul.f32 %v1016, %v70
    %v1019 = vpack.c.bf16 %v1018, %v1017
    %v1020 = vld [vmem:[#allocation7] sm:$0xff]
    %v1021 = vld [vmem:[#allocation7 + $0x8] sm:$0xff]
    %v1022 = vld [vmem:[#allocation7 + $0x10] sm:$0xff]
    %v1023 = vld [vmem:[#allocation7 + $0x18] sm:$0xff]
    %v1024 = vld [vmem:[#allocation7 + $0x20] sm:$0xff]
    %v1025 = vld [vmem:[#allocation7 + $0x28] sm:$0xff]
    %v1026 = vld [vmem:[#allocation7 + $0x30] sm:$0xff]
    %v1027 = vld [vmem:[#allocation7 + $0x38] sm:$0xff]
    %v1028 = vld [vmem:[#allocation7 + $0x40] sm:$0xff]
    %v1029 = vld [vmem:[#allocation7 + $0x48] sm:$0xff]
    %v1030 = vld [vmem:[#allocation7 + $0x50] sm:$0xff]
    %v1031 = vld [vmem:[#allocation7 + $0x58] sm:$0xff]
    %v1032 = vld [vmem:[#allocation7 + $0x60] sm:$0xff]
    %v1033 = vld [vmem:[#allocation7 + $0x68] sm:$0xff]
    %v1034 = vld [vmem:[#allocation7 + $0x70] sm:$0xff]
    %v1035 = vld [vmem:[#allocation7 + $0x78] sm:$0xff]
    %v1052 = vunpack.c.l.b16 %v1020
    %v1053 = vunpack.c.h.b16 %v1020
    %v1054 = vunpack.c.l.b16 %v1021
    %v1055 = vunpack.c.h.b16 %v1021
    %v1056 = vunpack.c.l.b16 %v1022
    %v1057 = vunpack.c.h.b16 %v1022
    %v1058 = vunpack.c.l.b16 %v1023
    %v1059 = vunpack.c.h.b16 %v1023
    %v1060 = vunpack.c.l.b16 %v1024
    %v1061 = vunpack.c.h.b16 %v1024
    %v1062 = vunpack.c.l.b16 %v1025
    %v1063 = vunpack.c.h.b16 %v1025
    %v1064 = vunpack.c.l.b16 %v1026
    %v1065 = vunpack.c.h.b16 %v1026
    %v1066 = vunpack.c.l.b16 %v1027
    %v1067 = vunpack.c.h.b16 %v1027
    %v1068 = vunpack.c.l.b16 %v1028
    %v1069 = vunpack.c.h.b16 %v1028
    %v1070 = vunpack.c.l.b16 %v1029
    %v1071 = vunpack.c.h.b16 %v1029
    %v1072 = vunpack.c.l.b16 %v1030
    %v1073 = vunpack.c.h.b16 %v1030
    %v1074 = vunpack.c.l.b16 %v1031
    %v1075 = vunpack.c.h.b16 %v1031
    %v1076 = vunpack.c.l.b16 %v1032
    %v1077 = vunpack.c.h.b16 %v1032
    %v1078 = vunpack.c.l.b16 %v1033
    %v1079 = vunpack.c.h.b16 %v1033
    %v1080 = vunpack.c.l.b16 %v1034
    %v1081 = vunpack.c.h.b16 %v1034
    %v1082 = vunpack.c.l.b16 %v1035
    %v1083 = vunpack.c.h.b16 %v1035
    %v1084 = vpack.c.b16 %v1056, %v1052
    %v1085 = vpack.c.b16 %v1057, %v1053
    %v1086 = vpack.c.b16 %v1058, %v1054
    %v1087 = vpack.c.b16 %v1059, %v1055
    %v1088 = vpack.c.b16 %v1064, %v1060
    %v1089 = vpack.c.b16 %v1065, %v1061
    %v1090 = vpack.c.b16 %v1066, %v1062
    %v1091 = vpack.c.b16 %v1067, %v1063
    %v1092 = vpack.c.b16 %v1072, %v1068
    %v1093 = vpack.c.b16 %v1073, %v1069
    %v1094 = vpack.c.b16 %v1074, %v1070
    %v1095 = vpack.c.b16 %v1075, %v1071
    %v1096 = vpack.c.b16 %v1080, %v1076
    %v1097 = vpack.c.b16 %v1081, %v1077
    %v1098 = vpack.c.b16 %v1082, %v1078
    %v1099 = vpack.c.b16 %v1083, %v1079
    %v1117 = vsel %vm73, %v1019, 0
    %1119 = vmatprep.subr.bf16.mxu0 0
    %1120 = vmatpush1.bf16.msra.mxu0 0
    %1121 = vmatprep.subr.bf16.mxu0 0
    %1122 = vmatpush1.bf16.msra.mxu0 0
    %1123 = vmatprep.subr.bf16.mxu0 0
    %1124 = vmatpush1.bf16.msra.mxu0 0
    %1125 = vmatprep.subr.bf16.mxu0 0
    %1126 = vmatpush1.bf16.msra.mxu0 0
    %1127 = vmatprep.subr.bf16.mxu0 %v1097
    %1128 = vmatpush1.bf16.msra.mxu0 %v1096
    %1129 = vmatprep.subr.bf16.mxu0 %v1093
    %1130 = vmatpush1.bf16.msra.mxu0 %v1092
    %1131 = vmatprep.subr.bf16.mxu0 %v1089
    %1132 = vmatpush1.bf16.msra.mxu0 %v1088
    %1133 = vmatprep.subr.bf16.mxu0 %v1085
    %1134 = vmatpush1.bf16.msra.mxu0 %v1084
    %1135 = vmatprep.subr.bf16.mxu0 0
    %1136 = vmatpush2.bf16.msra.mxu0 0
    %1137 = vmatprep.subr.bf16.mxu0 0
    %1138 = vmatpush2.bf16.msra.mxu0 0
    %1139 = vmatprep.subr.bf16.mxu0 0
    %1140 = vmatpush2.bf16.msra.mxu0 0
    %1141 = vmatprep.subr.bf16.mxu0 0
    %1142 = vmatpush2.bf16.msra.mxu0 0
    %1143 = vmatprep.subr.bf16.mxu0 0
    %1144 = vmatpush2.bf16.msra.mxu0 0
    %1145 = vmatprep.subr.bf16.mxu0 0
    %1146 = vmatpush2.bf16.msra.mxu0 0
    %1147 = vmatprep.subr.bf16.mxu0 0
    %1148 = vmatpush2.bf16.msra.mxu0 0
    %1149 = vmatprep.subr.bf16.mxu0 0
    %1150 = vmatpush2.bf16.msra.mxu0 0
    %1151 = vmatprep.mubr.bf16.mxu0 0
    %1152 = vmatmul.mubr.bf16.gmra.mxu0 %v1117
    %v1153 = vpop.f32.mrf.mxu0
    %v1154 = vadd.f32 0.0, %v1153
    %v1155 = vpop.f32.mrf.mxu0
    %v1156 = vadd.f32 0.0, %v1155
    %v1157 = vpop.f32.mrf.mxu0
    %v1158 = vadd.f32 0.0, %v1157
    %v1159 = vpop.f32.mrf.mxu0
    %v1160 = vadd.f32 0.0, %v1159
    %1161 = vdwg.mxu0
    %1162 = vmatprep.subr.bf16.mxu0 0
    %1163 = vmatpush1.bf16.msra.mxu0 0
    %1164 = vmatprep.subr.bf16.mxu0 0
    %1165 = vmatpush1.bf16.msra.mxu0 0
    %1166 = vmatprep.subr.bf16.mxu0 0
    %1167 = vmatpush1.bf16.msra.mxu0 0
    %1168 = vmatprep.subr.bf16.mxu0 0
    %1169 = vmatpush1.bf16.msra.mxu0 0
    %1170 = vmatprep.subr.bf16.mxu0 %v1099
    %1171 = vmatpush1.bf16.msra.mxu0 %v1098
    %1172 = vmatprep.subr.bf16.mxu0 %v1095
    %1173 = vmatpush1.bf16.msra.mxu0 %v1094
    %1174 = vmatprep.subr.bf16.mxu0 %v1091
    %1175 = vmatpush1.bf16.msra.mxu0 %v1090
    %1176 = vmatprep.subr.bf16.mxu0 %v1087
    %1177 = vmatpush1.bf16.msra.mxu0 %v1086
    %1178 = vmatprep.subr.bf16.mxu0 0
    %1179 = vmatpush2.bf16.msra.mxu0 0
    %1180 = vmatprep.subr.bf16.mxu0 0
    %1181 = vmatpush2.bf16.msra.mxu0 0
    %1182 = vmatprep.subr.bf16.mxu0 0
    %1183 = vmatpush2.bf16.msra.mxu0 0
    %1184 = vmatprep.subr.bf16.mxu0 0
    %1185 = vmatpush2.bf16.msra.mxu0 0
    %1186 = vmatprep.subr.bf16.mxu0 0
    %1187 = vmatpush2.bf16.msra.mxu0 0
    %1188 = vmatprep.subr.bf16.mxu0 0
    %1189 = vmatpush2.bf16.msra.mxu0 0
    %1190 = vmatprep.subr.bf16.mxu0 0
    %1191 = vmatpush2.bf16.msra.mxu0 0
    %1192 = vmatprep.subr.bf16.mxu0 0
    %1193 = vmatpush2.bf16.msra.mxu0 0
    %1194 = vmatprep.mubr.bf16.mxu0 0
    %1195 = vmatmul.mubr.bf16.gmra.mxu0 %v1117
    %v1196 = vpop.f32.mrf.mxu0
    %v1197 = vadd.f32 0.0, %v1196
    %v1198 = vpop.f32.mrf.mxu0
    %v1199 = vadd.f32 0.0, %v1198
    %v1200 = vpop.f32.mrf.mxu0
    %v1201 = vadd.f32 0.0, %v1200
    %v1202 = vpop.f32.mrf.mxu0
    %v1203 = vadd.f32 0.0, %v1202
    %1204 = vdwg.mxu0
    %v1205 = vxor.u32 %v1154, 2147483648
    %v1206 = vxor.u32 %v1156, 2147483648
    %v1207 = vxor.u32 %v1158, 2147483648
    %v1208 = vxor.u32 %v1160, 2147483648
    %v1209 = vmul.f32 %v1205, 1.442695
    %v1210 = vpow.pop %v1209
    %v1211 = vmul.f32 %v1206, 1.442695
    %v1212 = vpow.pop %v1211
    %v1213 = vmul.f32 %v1207, 1.442695
    %v1214 = vpow.pop %v1213
    %v1215 = vmul.f32 %v1208, 1.442695
    %v1216 = vpow.pop %v1215
    %v1217 = vadd.f32 %v1210, 1.0
    %v1218 = vadd.f32 %v1212, 1.0
    %v1219 = vadd.f32 %v1214, 1.0
    %v1220 = vadd.f32 %v1216, 1.0
    %v1221 = vrcp.pop %v1217
    %v1222 = vmul.f32 1.0, %v1221
    %v1223 = vrcp.pop %v1218
    %v1224 = vmul.f32 1.0, %v1223
    %v1225 = vrcp.pop %v1219
    %v1226 = vmul.f32 1.0, %v1225
    %v1227 = vrcp.pop %v1220
    %v1228 = vmul.f32 1.0, %v1227
    %v1229 = vmul.f32 %v1154, %v1222
    %v1230 = vmul.f32 %v1156, %v1224
    %v1231 = vmul.f32 %v1158, %v1226
    %v1232 = vmul.f32 %v1160, %v1228
    %v1233 = vmul.f32 %v1229, %v1197
    %v1234 = vmul.f32 %v1230, %v1199
    %v1235 = vmul.f32 %v1231, %v1201
    %v1236 = vmul.f32 %v1232, %v1203
    %v1237 = vpack.c.bf16 %v1235, %v1233
    %v1238 = vpack.c.bf16 %v1236, %v1234
    %v1239 = vld [vmem:[#allocation7 + $0x100] sm:$0xf]
    %v1240 = vld [vmem:[#allocation7 + $0x110] sm:$0xf]
    %v1241 = vld [vmem:[#allocation7 + $0x120] sm:$0xf]
    %v1242 = vld [vmem:[#allocation7 + $0x130] sm:$0xf]
    %v1243 = vld [vmem:[#allocation7 + $0x140] sm:$0xf]
    %v1244 = vld [vmem:[#allocation7 + $0x150] sm:$0xf]
    %v1245 = vld [vmem:[#allocation7 + $0x160] sm:$0xf]
    %v1246 = vld [vmem:[#allocation7 + $0x170] sm:$0xf]
    %v1247 = vld [vmem:[#allocation7 + $0x180] sm:$0xf]
    %v1248 = vld [vmem:[#allocation7 + $0x190] sm:$0xf]
    %v1249 = vld [vmem:[#allocation7 + $0x1a0] sm:$0xf]
    %v1250 = vld [vmem:[#allocation7 + $0x1b0] sm:$0xf]
    %v1251 = vld [vmem:[#allocation7 + $0x1c0] sm:$0xf]
    %v1252 = vld [vmem:[#allocation7 + $0x1d0] sm:$0xf]
    %v1253 = vld [vmem:[#allocation7 + $0x1e0] sm:$0xf]
    %v1254 = vld [vmem:[#allocation7 + $0x1f0] sm:$0xf]
    %v1255 = vld [vmem:[#allocation7 + $0x200] sm:$0xf]
    %v1256 = vld [vmem:[#allocation7 + $0x210] sm:$0xf]
    %v1257 = vld [vmem:[#allocation7 + $0x220] sm:$0xf]
    %v1258 = vld [vmem:[#allocation7 + $0x230] sm:$0xf]
    %v1259 = vld [vmem:[#allocation7 + $0x240] sm:$0xf]
    %v1260 = vld [vmem:[#allocation7 + $0x250] sm:$0xf]
    %v1261 = vld [vmem:[#allocation7 + $0x260] sm:$0xf]
    %v1262 = vld [vmem:[#allocation7 + $0x270] sm:$0xf]
    %v1263 = vld [vmem:[#allocation7 + $0x280] sm:$0xf]
    %v1264 = vld [vmem:[#allocation7 + $0x290] sm:$0xf]
    %v1265 = vld [vmem:[#allocation7 + $0x2a0] sm:$0xf]
    %v1266 = vld [vmem:[#allocation7 + $0x2b0] sm:$0xf]
    %v1267 = vld [vmem:[#allocation7 + $0x2c0] sm:$0xf]
    %v1268 = vld [vmem:[#allocation7 + $0x2d0] sm:$0xf]
    %v1269 = vld [vmem:[#allocation7 + $0x2e0] sm:$0xf]
    %v1270 = vld [vmem:[#allocation7 + $0x2f0] sm:$0xf]
    %v1303 = vunpack.c.l.b16 %v1239
    %v1304 = vunpack.c.l.b16 %v1240
    %v1305 = vunpack.c.l.b16 %v1241
    %v1306 = vunpack.c.l.b16 %v1242
    %v1307 = vunpack.c.l.b16 %v1243
    %v1308 = vunpack.c.l.b16 %v1244
    %v1309 = vunpack.c.l.b16 %v1245
    %v1310 = vunpack.c.l.b16 %v1246
    %v1311 = vunpack.c.l.b16 %v1247
    %v1312 = vunpack.c.l.b16 %v1248
    %v1313 = vunpack.c.l.b16 %v1249
    %v1314 = vunpack.c.l.b16 %v1250
    %v1315 = vunpack.c.l.b16 %v1251
    %v1316 = vunpack.c.l.b16 %v1252
    %v1317 = vunpack.c.l.b16 %v1253
    %v1318 = vunpack.c.l.b16 %v1254
    %v1319 = vunpack.c.l.b16 %v1255
    %v1320 = vunpack.c.l.b16 %v1256
    %v1321 = vunpack.c.l.b16 %v1257
    %v1322 = vunpack.c.l.b16 %v1258
    %v1323 = vunpack.c.l.b16 %v1259
    %v1324 = vunpack.c.l.b16 %v1260
    %v1325 = vunpack.c.l.b16 %v1261
    %v1326 = vunpack.c.l.b16 %v1262
    %v1327 = vunpack.c.l.b16 %v1263
    %v1328 = vunpack.c.l.b16 %v1264
    %v1329 = vunpack.c.l.b16 %v1265
    %v1330 = vunpack.c.l.b16 %v1266
    %v1331 = vunpack.c.l.b16 %v1267
    %v1332 = vunpack.c.l.b16 %v1268
    %v1333 = vunpack.c.l.b16 %v1269
    %v1334 = vunpack.c.l.b16 %v1270
    %v1335 = vpack.c.b16 %v1304, %v1303
    %v1336 = vpack.c.b16 %v1306, %v1305
    %v1337 = vpack.c.b16 %v1308, %v1307
    %v1338 = vpack.c.b16 %v1310, %v1309
    %v1339 = vpack.c.b16 %v1312, %v1311
    %v1340 = vpack.c.b16 %v1314, %v1313
    %v1341 = vpack.c.b16 %v1316, %v1315
    %v1342 = vpack.c.b16 %v1318, %v1317
    %v1343 = vpack.c.b16 %v1320, %v1319
    %v1344 = vpack.c.b16 %v1322, %v1321
    %v1345 = vpack.c.b16 %v1324, %v1323
    %v1346 = vpack.c.b16 %v1326, %v1325
    %v1347 = vpack.c.b16 %v1328, %v1327
    %v1348 = vpack.c.b16 %v1330, %v1329
    %v1349 = vpack.c.b16 %v1332, %v1331
    %v1350 = vpack.c.b16 %v1334, %v1333
    %1367 = vmatprep.subr.bf16.mxu0 0
    %1368 = vmatpush1.bf16.msra.mxu0 %v1342
    %1369 = vmatprep.subr.bf16.mxu0 0
    %1370 = vmatpush1.bf16.msra.mxu0 %v1341
    %1371 = vmatprep.subr.bf16.mxu0 0
    %1372 = vmatpush1.bf16.msra.mxu0 %v1340
    %1373 = vmatprep.subr.bf16.mxu0 0
    %1374 = vmatpush1.bf16.msra.mxu0 %v1339
    %1375 = vmatprep.subr.bf16.mxu0 0
    %1376 = vmatpush1.bf16.msra.mxu0 %v1338
    %1377 = vmatprep.subr.bf16.mxu0 0
    %1378 = vmatpush1.bf16.msra.mxu0 %v1337
    %1379 = vmatprep.subr.bf16.mxu0 0
    %1380 = vmatpush1.bf16.msra.mxu0 %v1336
    %1381 = vmatprep.subr.bf16.mxu0 0
    %1382 = vmatpush1.bf16.msra.mxu0 %v1335
    %1383 = vmatprep.subr.bf16.mxu0 0
    %1384 = vmatpush2.bf16.msra.mxu0 %v1350
    %1385 = vmatprep.subr.bf16.mxu0 0
    %1386 = vmatpush2.bf16.msra.mxu0 %v1349
    %1387 = vmatprep.subr.bf16.mxu0 0
    %1388 = vmatpush2.bf16.msra.mxu0 %v1348
    %1389 = vmatprep.subr.bf16.mxu0 0
    %1390 = vmatpush2.bf16.msra.mxu0 %v1347
    %1391 = vmatprep.subr.bf16.mxu0 0
    %1392 = vmatpush2.bf16.msra.mxu0 %v1346
    %1393 = vmatprep.subr.bf16.mxu0 0
    %1394 = vmatpush2.bf16.msra.mxu0 %v1345
    %1395 = vmatprep.subr.bf16.mxu0 0
    %1396 = vmatpush2.bf16.msra.mxu0 %v1344
    %1397 = vmatprep.subr.bf16.mxu0 0
    %1398 = vmatpush2.bf16.msra.mxu0 %v1343
    %1399 = vmatprep.mubr.bf16.mxu0 %v1238
    %1400 = vmatmul.mubr.bf16.gmra.mxu0 %v1237
    %v1401 = vpop.f32.mrf.mxu0
    %v1402 = vadd.f32 0.0, %v1401
    %v1403 = vpop.f32.mrf.mxu0
    %v1404 = vpop.f32.mrf.mxu0
    %v1405 = vadd.f32 0.0, %v1404
    %v1406 = vpop.f32.mrf.mxu0
    %1407 = vdwg.mxu0
    %v1408 = vadd.f32 %v999, %v1402
    %v1409 = vadd.f32 %v1000, %v1405
    %1410 = vst.msk [vmem:[#allocation8] sm:$0xff] %vm73, %v1408
    %1411 = vst.msk [vmem:[#allocation8 + $0x8] sm:$0xff] %vm73, %v1409
    // Predicated region
    $region26: #{tpu_custom_call.1} parent=1 // pred_check
      _
    $region27: #{tpu_custom_call.1} parent=1 // pred_check_branch
      %1413 = sbr.rel (0) target = $region29
    $region28: #{tpu_custom_call.1} parent=1 // pred_region
      %s1415 = ssub.s32 256, 256
      %1416 = vsyncadd [#allocation4], %s1415
      %s1417 = sshll.u32 [#allocation8], 4
      %s1418 = int_to_ptr.vmem [resolvable:$true] %s1417
      %1423 = dma.vmem_to_hbm [thread:$0]  %s1418, 256, %s3, [#allocation4], 128, 128, 8
    $region29: #{tpu_custom_call.1} parent=1 // pred_fallthru
      _
    // Predicated region
    $region30: #{tpu_custom_call.1} parent=1 // pred_check
      _
    $region31: #{tpu_custom_call.1} parent=1 // pred_check_branch
      %1425 = sbr.rel (0) target = $region33
    $region32: #{tpu_custom_call.1} parent=1 // pred_region
      %1426 = dma.done [#allocation4], 256
    $region33: #{tpu_custom_call.1} parent=1 // pred_fallthru
      _
    %1427 = vsyncpa [#allocation3], 1
    %1428 = vsyncpa [#allocation6], 1
    %1429 = vsyncpa [#allocation4], 1

</llo_original>
